<compile_context>
chip_gen: v5e
topology: v5e:2x2
jax: 0.10.0
libtpu: 0.0.40
codegen_flags: <defaults>
</compile_context>

<pallas_src>
from functools import partial

import jax
import jax.numpy as jnp
from jax.experimental import pallas as pl
from jax.experimental.pallas import tpu as pltpu

# ---------------- small synthetic CLIP-vision config ----------------
IMAGE_SIZE = 16
PATCH_SIZE = 8
CHANNELS = 3
HIDDEN = 32
HEADS = 4
HEAD_DIM = HIDDEN // HEADS
INTERMEDIATE = 64
LAYERS = 3           # hidden_states[-2] == output after LAYERS-1 encoder layers
EPS = 1e-5


def _ln(v, g, b):
    mu = jnp.mean(v, axis=-1, keepdims=True)
    var = jnp.mean(jnp.square(v - mu), axis=-1, keepdims=True)
    return (v - mu) * jax.lax.rsqrt(var + EPS) * g + b


# ---------------- fused tower kernel ----------------
def _tower_kernel(patches_ref, wpatch_ref, base_ref, preln_ref, lvecs_ref,
                  wqkv_ref, bqkv_ref, wo_ref, w1_ref, b1_ref, w2_ref,
                  o_ref, *, seq):
    """grid = (batch, layer). o_ref (1, S_PAD, D) is the VMEM-resident activation."""
    _, s_pad, d = o_ref.shape
    _, heads, _, three_hd = wqkv_ref.shape
    head_dim = three_hd // 3
    scale = head_dim ** -0.5

    layer = pl.program_id(1)

    # ---- step 0: patch-embed matmul + class/pos embedding + pre-LN ----
    @pl.when(layer == 0)
    def _embed():
        pe = jnp.dot(patches_ref[0], wpatch_ref[...],
                     preferred_element_type=jnp.float32)            # (S_PAD, D)
        x0 = base_ref[...] + pe                                     # cls/pos already in base
        pre = preln_ref[...]                                        # (2, D)
        o_ref[0] = _ln(x0, pre[0:1, :], pre[1:2, :])

    # ---- encoder layer `layer` (pre-LN attention + pre-LN quick-gelu MLP) ----
    lv = lvecs_ref[0]                                               # (6, D) f32
    ln1g, ln1b = lv[0:1, :], lv[1:2, :]
    ln2g, ln2b = lv[2:3, :], lv[3:4, :]
    bo, b2 = lv[4:5, :], lv[5:6, :]

    x = o_ref[0]                                                    # (S_PAD, D) f32
    h = _ln(x, ln1g, ln1b)

    # fused head-major QKV projection: (H, S, D) x (H, D, 3*hd) -> (H, S, 3*hd)
    hb = jnp.broadcast_to(h.astype(jnp.bfloat16)[None], (heads, s_pad, d))
    qkv = jnp.einsum('hsd,hde->hse', hb, wqkv_ref[0],
                     preferred_element_type=jnp.float32) + bqkv_ref[0]
    q = qkv[:, :, :head_dim] * scale                                # (H, S, hd) f32
    k = qkv[:, :, head_dim:2 * head_dim]
    v = qkv[:, :, 2 * head_dim:]

    # scaled dot-product attention, padded key positions masked out
    sc = jnp.einsum('hqd,hkd->hqk', q.astype(jnp.bfloat16), k.astype(jnp.bfloat16),
                    preferred_element_type=jnp.float32)             # (H, S, S)
    key_ok = jax.lax.broadcasted_iota(jnp.int32, (heads, s_pad, s_pad), 2) < seq
    sc = jnp.where(key_ok, sc, -1e30)
    sc = sc - jnp.max(sc, axis=-1, keepdims=True)
    p = jnp.exp(sc)
    p = p * pl.reciprocal(jnp.sum(p, axis=-1, keepdims=True), approx=True)

    ctx = jnp.einsum('hqk,hkd->hqd', p.astype(jnp.bfloat16), v.astype(jnp.bfloat16),
                     preferred_element_type=jnp.float32)            # (H, S, hd)
    attn = jnp.einsum('hsd,hdk->hsk', ctx.astype(jnp.bfloat16), wo_ref[0],
                      preferred_element_type=jnp.float32)           # (H, S, D)
    attn = jnp.sum(attn, axis=0) + bo                               # (S, D)

    x1 = x + attn                                                   # residual 1
    h2 = _ln(x1, ln2g, ln2b)
    m = jnp.dot(h2.astype(jnp.bfloat16), w1_ref[0],
                preferred_element_type=jnp.float32) + b1_ref[0]
    m = m * jax.nn.sigmoid(1.702 * m)                               # quick_gelu (CLIP)
    m = jnp.dot(m.astype(jnp.bfloat16), w2_ref[0],
                preferred_element_type=jnp.float32) + b2
    o_ref[0] = x1 + m                                               # residual 2


# ---------------- parameter init (deterministic, synthetic) ----------------
def init_params(key):
    D, C, P, I = HIDDEN, CHANNELS, PATCH_SIZE, INTERMEDIATE
    num_patches = (IMAGE_SIZE // P) ** 2
    num_pos = num_patches + 1
    keys = jax.random.split(key, 4 + LAYERS)
    params = {
        # torch Conv2d weight layout (out_ch, in_ch, kh, kw), bias=False
        'patch_w': 0.02 * jax.random.normal(keys[0], (D, C, P, P), jnp.float32),
        'class_emb': 0.02 * jax.random.normal(keys[1], (D,), jnp.float32),
        'pos_emb': 0.02 * jax.random.normal(keys[2], (num_pos, D), jnp.float32),
        'pre_ln_g': jnp.ones((1, D), jnp.float32),
        'pre_ln_b': jnp.zeros((1, D), jnp.float32),
        'layers': [],
    }
    for li in range(LAYERS):
        lk = jax.random.split(keys[4 + li], 6)
        params['layers'].append({
            'ln1_g': jnp.ones((1, D), jnp.float32), 'ln1_b': jnp.zeros((1, D), jnp.float32),
            'wq': 0.02 * jax.random.normal(lk[0], (D, D), jnp.float32), 'bq': jnp.zeros((1, D), jnp.float32),
            'wk': 0.02 * jax.random.normal(lk[1], (D, D), jnp.float32), 'bk': jnp.zeros((1, D), jnp.float32),
            'wv': 0.02 * jax.random.normal(lk[2], (D, D), jnp.float32), 'bv': jnp.zeros((1, D), jnp.float32),
            'wo': 0.02 * jax.random.normal(lk[3], (D, D), jnp.float32), 'bo': jnp.zeros((1, D), jnp.float32),
            'ln2_g': jnp.ones((1, D), jnp.float32), 'ln2_b': jnp.zeros((1, D), jnp.float32),
            'w1': 0.02 * jax.random.normal(lk[4], (D, I), jnp.float32), 'b1': jnp.zeros((1, I), jnp.float32),
            'w2': 0.02 * jax.random.normal(lk[5], (I, D), jnp.float32), 'b2': jnp.zeros((1, D), jnp.float32),
        })
    return params


# ---------------- VisionTower.forward ----------------
def vision_tower_forward(x, params, vision_feature_layer=-2,
                         vision_feature_select_strategy='patch'):
    # layout: x is NCHW (B, C, H, W), matching the PyTorch module.
    x = x.astype(jnp.float32)
    B, C, H, W = x.shape
    P, D, I = PATCH_SIZE, HIDDEN, INTERMEDIATE
    nph, npw = H // P, W // P
    num_patches = nph * npw
    seq = num_patches + 1                       # CLS + patches
    s_pad = ((seq + 7) // 8) * 8                # sublane-pad token axis
    cpp = C * P * P

    # hidden_states has LAYERS+1 entries; hidden_states[idx] = output after
    # `idx` encoder layers -> only run what is needed (skips the final layer
    # for the default vision_feature_layer=-2).
    idx = vision_feature_layer if vision_feature_layer >= 0 else LAYERS + 1 + vision_feature_layer
    n_run = idx
    assert 1 <= n_run <= LAYERS, f"unsupported vision_feature_layer={vision_feature_layer}"

    # --- im2col patches, row-padded so token i holds patch i-1 (row 0 / tail = 0) ---
    patches = x.reshape(B, C, nph, P, npw, P).transpose(0, 2, 4, 1, 3, 5)
    patches = patches.reshape(B, num_patches, cpp)
    patches_pad = jnp.zeros((B, s_pad, cpp), jnp.float32)
    patches_pad = patches_pad.at[:, 1:1 + num_patches].set(patches).astype(jnp.bfloat16)

    wpatch = params['patch_w'].reshape(D, cpp).T.astype(jnp.bfloat16)        # (cpp, D)

    # class + position embeddings folded into one (S_PAD, D) base slab
    base = jnp.zeros((s_pad, D), jnp.float32)
    base = base.at[0].set(params['class_emb'])
    base = base.at[:seq].add(params['pos_emb'])

    preln = jnp.concatenate([params['pre_ln_g'], params['pre_ln_b']], axis=0)  # (2, D)

    # --- stack per-layer weights on a leading layer axis (head-major attention) ---
    lys = params['layers'][:n_run]

    def _qkv_h(lp):
        wq = lp['wq'].reshape(D, HEADS, HEAD_DIM)
        wk = lp['wk'].reshape(D, HEADS, HEAD_DIM)
        wv = lp['wv'].reshape(D, HEADS, HEAD_DIM)
        return jnp.transpose(jnp.concatenate([wq, wk, wv], axis=-1), (1, 0, 2))  # (H, D, 3hd)

    def _bqkv_h(lp):
        bq = lp['bq'].reshape(HEADS, HEAD_DIM)
        bk = lp['bk'].reshape(HEADS, HEAD_DIM)
        bv = lp['bv'].reshape(HEADS, HEAD_DIM)
        return jnp.concatenate([bq, bk, bv], axis=-1)[:, None, :]                # (H, 1, 3hd)

    lvecs = jnp.stack([jnp.concatenate([lp['ln1_g'], lp['ln1_b'], lp['ln2_g'],
                                        lp['ln2_b'], lp['bo'], lp['b2']], axis=0)
                       for lp in lys])                                           # (L, 6, D)
    wqkv_h = jnp.stack([_qkv_h(lp) for lp in lys]).astype(jnp.bfloat16)          # (L, H, D, 3hd)
    bqkv_h = jnp.stack([_bqkv_h(lp) for lp in lys])                              # (L, H, 1, 3hd)
    wo_h = jnp.stack([lp['wo'].reshape(HEADS, HEAD_DIM, D) for lp in lys]).astype(jnp.bfloat16)
    w1s = jnp.stack([lp['w1'] for lp in lys]).astype(jnp.bfloat16)               # (L, D, I)
    b1s = jnp.stack([lp['b1'] for lp in lys])                                    # (L, 1, I)
    w2s = jnp.stack([lp['w2'] for lp in lys]).astype(jnp.bfloat16)               # (L, I, D)

    three_hd = 3 * HEAD_DIM
    out = pl.pallas_call(
        partial(_tower_kernel, seq=seq),
        out_shape=jax.ShapeDtypeStruct((B, s_pad, D), jnp.float32),
        grid=(B, n_run),
        in_specs=[
            pl.BlockSpec((1, s_pad, cpp), lambda b, l: (b, 0, 0)),
            pl.BlockSpec((cpp, D), lambda b, l: (0, 0)),
            pl.BlockSpec((s_pad, D), lambda b, l: (0, 0)),
            pl.BlockSpec((2, D), lambda b, l: (0, 0)),
            pl.BlockSpec((1, 6, D), lambda b, l: (l, 0, 0)),
            pl.BlockSpec((1, HEADS, D, three_hd), lambda b, l: (l, 0, 0, 0)),
            pl.BlockSpec((1, HEADS, 1, three_hd), lambda b, l: (l, 0, 0, 0)),
            pl.BlockSpec((1, HEADS, HEAD_DIM, D), lambda b, l: (l, 0, 0, 0)),
            pl.BlockSpec((1, D, I), lambda b, l: (l, 0, 0)),
            pl.BlockSpec((1, 1, I), lambda b, l: (l, 0, 0)),
            pl.BlockSpec((1, I, D), lambda b, l: (l, 0, 0)),
        ],
        out_specs=pl.BlockSpec((1, s_pad, D), lambda b, l: (b, 0, 0)),
        compiler_params=pltpu.CompilerParams(
            dimension_semantics=("parallel", "arbitrary"),
            vmem_limit_bytes=32 * 1024 * 1024,
        ),
    )(patches_pad, wpatch, base, preln, lvecs, wqkv_h, bqkv_h, wo_h, w1s, b1s, w2s)

    if vision_feature_select_strategy == 'patch':
        return out[:, 1:seq]
    elif vision_feature_select_strategy == 'cls_patch':
        return out[:, :seq]
    else:
        raise ValueError(f"Unexpected select feature: {vision_feature_select_strategy}")


if __name__ == "__main__":
    key = jax.random.PRNGKey(0)
    kx, kp = jax.random.split(key)
    x = jax.random.normal(kx, (2, CHANNELS, IMAGE_SIZE, IMAGE_SIZE), jnp.float32)
    params = init_params(kp)

    fwd = jax.jit(vision_tower_forward,
                  static_argnames=('vision_feature_layer',
                                   'vision_feature_select_strategy'))
    out = fwd(x, params)
    out = jax.block_until_ready(out)

    expected_shape = (2, (IMAGE_SIZE // PATCH_SIZE) ** 2, HIDDEN)
    assert out.shape == expected_shape, out.shape
    assert bool(jnp.all(jnp.isfinite(out)))
    print("KERNEL_OK")
</pallas_src>

<mosaic_0001>
module attributes {stable_mosaic.version = 11 : i64} {
  func.func @_tower_kernel(%arg0: i32, %arg1: i32, %arg2: memref<1x8x192xbf16, #tpu.memory_space<vmem>>, %arg3: memref<192x32xbf16, #tpu.memory_space<vmem>>, %arg4: memref<8x32xf32, #tpu.memory_space<vmem>>, %arg5: memref<2x32xf32, #tpu.memory_space<vmem>>, %arg6: memref<1x6x32xf32, #tpu.memory_space<vmem>>, %arg7: memref<1x4x32x24xbf16, #tpu.memory_space<vmem>>, %arg8: memref<1x4x1x24xf32, #tpu.memory_space<vmem>>, %arg9: memref<1x4x8x32xbf16, #tpu.memory_space<vmem>>, %arg10: memref<1x32x64xbf16, #tpu.memory_space<vmem>>, %arg11: memref<1x1x64xf32, #tpu.memory_space<vmem>>, %arg12: memref<1x64x32xbf16, #tpu.memory_space<vmem>>, %arg13: memref<1x8x32xf32, #tpu.memory_space<vmem>>) attributes {dimension_semantics = [#tpu.dimension_semantics<parallel>, #tpu.dimension_semantics<arbitrary>], iteration_bounds = array<i64: 2, 2>, scalar_prefetch = 0 : i64, scratch_operands = 0 : i64, tpu.core_type = #tpu.core_type<tc>, window_params = [{transform_indices = @transform_0, window_bounds = array<i64: 1, 8, 192>}, {pipeline_mode = #tpu.pipeline_mode<synchronous>, transform_indices = @transform_1, window_bounds = array<i64: 192, 32>}, {pipeline_mode = #tpu.pipeline_mode<synchronous>, transform_indices = @transform_2, window_bounds = array<i64: 8, 32>}, {pipeline_mode = #tpu.pipeline_mode<synchronous>, transform_indices = @transform_3, window_bounds = array<i64: 2, 32>}, {transform_indices = @transform_4, window_bounds = array<i64: 1, 6, 32>}, {transform_indices = @transform_5, window_bounds = array<i64: 1, 4, 32, 24>}, {transform_indices = @transform_6, window_bounds = array<i64: 1, 4, 1, 24>}, {transform_indices = @transform_7, window_bounds = array<i64: 1, 4, 8, 32>}, {transform_indices = @transform_8, window_bounds = array<i64: 1, 32, 64>}, {transform_indices = @transform_9, window_bounds = array<i64: 1, 1, 64>}, {transform_indices = @transform_10, window_bounds = array<i64: 1, 64, 32>}, {transform_indices = @transform_11, window_bounds = array<i64: 1, 8, 32>}]} {
    %c0_i32 = arith.constant 0 : i32
    %0 = arith.cmpi eq, %arg1, %c0_i32 : i32
    %1 = arith.extui %0 : i1 to i32
    %c0_i32_0 = arith.constant 0 : i32
    %2 = arith.cmpi ne, %1, %c0_i32_0 : i32
    scf.if %2 {
      %c0_52 = arith.constant 0 : index
      %c0_53 = arith.constant 0 : index
      %c0_54 = arith.constant 0 : index
      %128 = vector.load %arg2[%c0_52, %c0_53, %c0_54] : memref<1x8x192xbf16, #tpu.memory_space<vmem>>, vector<1x8x192xbf16>
      %129 = vector.shape_cast %128 : vector<1x8x192xbf16> to vector<8x192xbf16>
      %c0_55 = arith.constant 0 : index
      %c0_56 = arith.constant 0 : index
      %130 = vector.load %arg3[%c0_55, %c0_56] : memref<192x32xbf16, #tpu.memory_space<vmem>>, vector<192x32xbf16>
      %cst_57 = arith.constant dense<0.000000e+00> : vector<8x32xf32>
      %131 = tpu.matmul %129, %130, %cst_57 {dimension_numbers = #tpu.dot_dimension_numbers<[1], [0], [0], [1], [0, 0, 1, 1], [], []>} : vector<8x192xbf16>, vector<192x32xbf16>, vector<8x32xf32> -> vector<8x32xf32>
      %c0_58 = arith.constant 0 : index
      %c0_59 = arith.constant 0 : index
      %132 = vector.load %arg4[%c0_58, %c0_59] : memref<8x32xf32, #tpu.memory_space<vmem>>, vector<8x32xf32>
      %133 = arith.addf %132, %131 : vector<8x32xf32>
      %c0_60 = arith.constant 0 : index
      %c0_61 = arith.constant 0 : index
      %134 = vector.load %arg5[%c0_60, %c0_61] : memref<2x32xf32, #tpu.memory_space<vmem>>, vector<2x32xf32>
      %135 = vector.extract_strided_slice %134 {offsets = [0, 0], sizes = [1, 32], strides = [1, 1]} : vector<2x32xf32> to vector<1x32xf32>
      %136 = vector.extract_strided_slice %134 {offsets = [1, 0], sizes = [1, 32], strides = [1, 1]} : vector<2x32xf32> to vector<1x32xf32>
      %cst_62 = arith.constant dense<0.000000e+00> : vector<8xf32>
      %137 = vector.multi_reduction <add>, %133, %cst_62 [1] : vector<8x32xf32> to vector<8xf32>
      %138 = vector.shape_cast %137 : vector<8xf32> to vector<8x1xf32>
      %cst_63 = arith.constant 3.200000e+01 : f32
      %139 = vector.broadcast %cst_63 : f32 to vector<8x1xf32>
      %140 = arith.divf %138, %139 : vector<8x1xf32>
      %141 = vector.broadcast %140 : vector<8x1xf32> to vector<8x32xf32>
      %142 = arith.subf %133, %141 : vector<8x32xf32>
      %143 = arith.mulf %142, %142 : vector<8x32xf32>
      %cst_64 = arith.constant dense<0.000000e+00> : vector<8xf32>
      %144 = vector.multi_reduction <add>, %143, %cst_64 [1] : vector<8x32xf32> to vector<8xf32>
      %145 = vector.shape_cast %144 : vector<8xf32> to vector<8x1xf32>
      %cst_65 = arith.constant 3.200000e+01 : f32
      %146 = vector.broadcast %cst_65 : f32 to vector<8x1xf32>
      %147 = arith.divf %145, %146 : vector<8x1xf32>
      %148 = vector.broadcast %140 : vector<8x1xf32> to vector<8x32xf32>
      %149 = arith.subf %133, %148 : vector<8x32xf32>
      %cst_66 = arith.constant 9.99999974E-6 : f32
      %150 = vector.broadcast %cst_66 : f32 to vector<8x1xf32>
      %151 = arith.addf %147, %150 : vector<8x1xf32>
      %152 = math.rsqrt %151 : vector<8x1xf32>
      %153 = vector.broadcast %152 : vector<8x1xf32> to vector<8x32xf32>
      %154 = arith.mulf %149, %153 : vector<8x32xf32>
      %155 = vector.broadcast %135 : vector<1x32xf32> to vector<8x32xf32>
      %156 = arith.mulf %154, %155 : vector<8x32xf32>
      %157 = vector.broadcast %136 : vector<1x32xf32> to vector<8x32xf32>
      %158 = arith.addf %156, %157 : vector<8x32xf32>
      %c0_67 = arith.constant 0 : index
      %c0_68 = arith.constant 0 : index
      %c0_69 = arith.constant 0 : index
      %159 = vector.load %arg13[%c0_67, %c0_68, %c0_69] : memref<1x8x32xf32, #tpu.memory_space<vmem>>, vector<1x8x32xf32>
      %160 = vector.shape_cast %159 : vector<1x8x32xf32> to vector<8x32xf32>
      %161 = vector.shape_cast %158 : vector<8x32xf32> to vector<1x8x32xf32>
      tpu.vector_store %arg13[%c0_67, %c0_68, %c0_69], %161 {strides = array<i32>} : memref<1x8x32xf32, #tpu.memory_space<vmem>>, vector<1x8x32xf32>,
    } else {
    }
    %c0 = arith.constant 0 : index
    %c0_1 = arith.constant 0 : index
    %c0_2 = arith.constant 0 : index
    %3 = vector.load %arg6[%c0, %c0_1, %c0_2] : memref<1x6x32xf32, #tpu.memory_space<vmem>>, vector<1x6x32xf32>
    %4 = vector.shape_cast %3 : vector<1x6x32xf32> to vector<6x32xf32>
    %5 = vector.extract_strided_slice %4 {offsets = [0, 0], sizes = [1, 32], strides = [1, 1]} : vector<6x32xf32> to vector<1x32xf32>
    %6 = vector.extract_strided_slice %4 {offsets = [1, 0], sizes = [1, 32], strides = [1, 1]} : vector<6x32xf32> to vector<1x32xf32>
    %7 = vector.extract_strided_slice %4 {offsets = [2, 0], sizes = [1, 32], strides = [1, 1]} : vector<6x32xf32> to vector<1x32xf32>
    %8 = vector.extract_strided_slice %4 {offsets = [3, 0], sizes = [1, 32], strides = [1, 1]} : vector<6x32xf32> to vector<1x32xf32>
    %9 = vector.extract_strided_slice %4 {offsets = [4, 0], sizes = [1, 32], strides = [1, 1]} : vector<6x32xf32> to vector<1x32xf32>
    %10 = vector.extract_strided_slice %4 {offsets = [5, 0], sizes = [1, 32], strides = [1, 1]} : vector<6x32xf32> to vector<1x32xf32>
    %c0_3 = arith.constant 0 : index
    %c0_4 = arith.constant 0 : index
    %c0_5 = arith.constant 0 : index
    %11 = vector.load %arg13[%c0_3, %c0_4, %c0_5] : memref<1x8x32xf32, #tpu.memory_space<vmem>>, vector<1x8x32xf32>
    %12 = vector.shape_cast %11 : vector<1x8x32xf32> to vector<8x32xf32>
    %cst = arith.constant dense<0.000000e+00> : vector<8xf32>
    %13 = vector.multi_reduction <add>, %12, %cst [1] : vector<8x32xf32> to vector<8xf32>
    %14 = vector.shape_cast %13 : vector<8xf32> to vector<8x1xf32>
    %cst_6 = arith.constant 3.200000e+01 : f32
    %15 = vector.broadcast %cst_6 : f32 to vector<8x1xf32>
    %16 = arith.divf %14, %15 : vector<8x1xf32>
    %17 = vector.broadcast %16 : vector<8x1xf32> to vector<8x32xf32>
    %18 = arith.subf %12, %17 : vector<8x32xf32>
    %19 = arith.mulf %18, %18 : vector<8x32xf32>
    %cst_7 = arith.constant dense<0.000000e+00> : vector<8xf32>
    %20 = vector.multi_reduction <add>, %19, %cst_7 [1] : vector<8x32xf32> to vector<8xf32>
    %21 = vector.shape_cast %20 : vector<8xf32> to vector<8x1xf32>
    %cst_8 = arith.constant 3.200000e+01 : f32
    %22 = vector.broadcast %cst_8 : f32 to vector<8x1xf32>
    %23 = arith.divf %21, %22 : vector<8x1xf32>
    %24 = vector.broadcast %16 : vector<8x1xf32> to vector<8x32xf32>
    %25 = arith.subf %12, %24 : vector<8x32xf32>
    %cst_9 = arith.constant 9.99999974E-6 : f32
    %26 = vector.broadcast %cst_9 : f32 to vector<8x1xf32>
    %27 = arith.addf %23, %26 : vector<8x1xf32>
    %28 = math.rsqrt %27 : vector<8x1xf32>
    %29 = vector.broadcast %28 : vector<8x1xf32> to vector<8x32xf32>
    %30 = arith.mulf %25, %29 : vector<8x32xf32>
    %31 = vector.broadcast %5 : vector<1x32xf32> to vector<8x32xf32>
    %32 = arith.mulf %30, %31 : vector<8x32xf32>
    %33 = vector.broadcast %6 : vector<1x32xf32> to vector<8x32xf32>
    %34 = arith.addf %32, %33 : vector<8x32xf32>
    %35 = arith.truncf %34 : vector<8x32xf32> to vector<8x32xbf16>
    %36 = vector.shape_cast %35 : vector<8x32xbf16> to vector<1x8x32xbf16>
    %37 = vector.shape_cast %36 : vector<1x8x32xbf16> to vector<1x8x32xbf16>
    %38 = vector.broadcast %37 : vector<1x8x32xbf16> to vector<4x8x32xbf16>
    %c0_10 = arith.constant 0 : index
    %c0_11 = arith.constant 0 : index
    %c0_12 = arith.constant 0 : index
    %c0_13 = arith.constant 0 : index
    %39 = vector.load %arg7[%c0_10, %c0_11, %c0_12, %c0_13] : memref<1x4x32x24xbf16, #tpu.memory_space<vmem>>, vector<1x4x32x24xbf16>
    %40 = vector.shape_cast %39 : vector<1x4x32x24xbf16> to vector<4x32x24xbf16>
    "tpu.trace_start"() <{level = 10 : i32, message = "hsd,hde->hse"}> : () -> ()
    %cst_14 = arith.constant dense<0.000000e+00> : vector<4x8x24xf32>
    %41 = tpu.matmul %38, %40, %cst_14 {dimension_numbers = #tpu.dot_dimension_numbers<[2], [1], [1], [2], [0, 0, 0, 1, 1, 2], [0], [0]>} : vector<4x8x32xbf16>, vector<4x32x24xbf16>, vector<4x8x24xf32> -> vector<4x8x24xf32>
    "tpu.trace_stop"() : () -> ()
    %c0_15 = arith.constant 0 : index
    %c0_16 = arith.constant 0 : index
    %c0_17 = arith.constant 0 : index
    %c0_18 = arith.constant 0 : index
    %42 = vector.load %arg8[%c0_15, %c0_16, %c0_17, %c0_18] : memref<1x4x1x24xf32, #tpu.memory_space<vmem>>, vector<1x4x1x24xf32>
    %43 = vector.shape_cast %42 : vector<1x4x1x24xf32> to vector<4x1x24xf32>
    %44 = vector.broadcast %43 : vector<4x1x24xf32> to vector<4x8x24xf32>
    %45 = arith.addf %41, %44 : vector<4x8x24xf32>
    %46 = vector.extract_strided_slice %45 {offsets = [0, 0, 0], sizes = [4, 8, 8], strides = [1, 1, 1]} : vector<4x8x24xf32> to vector<4x8x8xf32>
    %cst_19 = arith.constant 0.353553385 : f32
    %47 = vector.broadcast %cst_19 : f32 to vector<4x8x8xf32>
    %48 = arith.mulf %46, %47 : vector<4x8x8xf32>
    %49 = vector.extract_strided_slice %45 {offsets = [0, 0, 8], sizes = [4, 8, 8], strides = [1, 1, 1]} : vector<4x8x24xf32> to vector<4x8x8xf32>
    %50 = vector.extract_strided_slice %45 {offsets = [0, 0, 16], sizes = [4, 8, 8], strides = [1, 1, 1]} : vector<4x8x24xf32> to vector<4x8x8xf32>
    %51 = arith.truncf %48 : vector<4x8x8xf32> to vector<4x8x8xbf16>
    %52 = arith.truncf %49 : vector<4x8x8xf32> to vector<4x8x8xbf16>
    "tpu.trace_start"() <{level = 10 : i32, message = "hqd,hkd->hqk"}> : () -> ()
    %cst_20 = arith.constant dense<0.000000e+00> : vector<4x8x8xf32>
    %53 = tpu.matmul %51, %52, %cst_20 {dimension_numbers = #tpu.dot_dimension_numbers<[2], [2], [1], [1], [0, 0, 0, 1, 1, 1], [0], [0]>} : vector<4x8x8xbf16>, vector<4x8x8xbf16>, vector<4x8x8xf32> -> vector<4x8x8xf32>
    "tpu.trace_stop"() : () -> ()
    %54 = tpu.iota {dimensions = array<i32: 2>} : vector<4x8x8xi32>
    %c5_i32 = arith.constant 5 : i32
    %55 = vector.broadcast %c5_i32 : i32 to vector<4x8x8xi32>
    %56 = arith.cmpi slt, %54, %55 : vector<4x8x8xi32>
    %cst_21 = arith.constant -1.000000e+30 : f32
    %57 = vector.broadcast %cst_21 : f32 to vector<4x8x8xf32>
    %58 = arith.select %56, %53, %57 : vector<4x8x8xi1>, vector<4x8x8xf32>
    %cst_22 = arith.constant dense<0xFF800000> : vector<4x8xf32>
    %59 = vector.multi_reduction <maximumf>, %58, %cst_22 [2] : vector<4x8x8xf32> to vector<4x8xf32>
    %60 = vector.shape_cast %59 : vector<4x8xf32> to vector<4x8x1xf32>
    %61 = vector.broadcast %60 : vector<4x8x1xf32> to vector<4x8x8xf32>
    %62 = arith.subf %58, %61 : vector<4x8x8xf32>
    %63 = math.exp %62 : vector<4x8x8xf32>
    %cst_23 = arith.constant dense<0.000000e+00> : vector<4x8xf32>
    %64 = vector.multi_reduction <add>, %63, %cst_23 [2] : vector<4x8x8xf32> to vector<4x8xf32>
    %65 = vector.shape_cast %64 : vector<4x8xf32> to vector<4x8x1xf32>
    %66 = tpu.reciprocal %65 {approx = true} : vector<4x8x1xf32> -> vector<4x8x1xf32>
    %67 = vector.broadcast %66 : vector<4x8x1xf32> to vector<4x8x8xf32>
    %68 = arith.mulf %63, %67 : vector<4x8x8xf32>
    %69 = arith.truncf %68 : vector<4x8x8xf32> to vector<4x8x8xbf16>
    %70 = arith.truncf %50 : vector<4x8x8xf32> to vector<4x8x8xbf16>
    "tpu.trace_start"() <{level = 10 : i32, message = "hqk,hkd->hqd"}> : () -> ()
    %cst_24 = arith.constant dense<0.000000e+00> : vector<4x8x8xf32>
    %71 = tpu.matmul %69, %70, %cst_24 {dimension_numbers = #tpu.dot_dimension_numbers<[2], [1], [1], [2], [0, 0, 0, 1, 1, 2], [0], [0]>} : vector<4x8x8xbf16>, vector<4x8x8xbf16>, vector<4x8x8xf32> -> vector<4x8x8xf32>
    "tpu.trace_stop"() : () -> ()
    %72 = arith.truncf %71 : vector<4x8x8xf32> to vector<4x8x8xbf16>
    %c0_25 = arith.constant 0 : index
    %c0_26 = arith.constant 0 : index
    %c0_27 = arith.constant 0 : index
    %c0_28 = arith.constant 0 : index
    %73 = vector.load %arg9[%c0_25, %c0_26, %c0_27, %c0_28] : memref<1x4x8x32xbf16, #tpu.memory_space<vmem>>, vector<1x4x8x32xbf16>
    %74 = vector.shape_cast %73 : vector<1x4x8x32xbf16> to vector<4x8x32xbf16>
    "tpu.trace_start"() <{level = 10 : i32, message = "hsd,hdk->hsk"}> : () -> ()
    %cst_29 = arith.constant dense<0.000000e+00> : vector<4x8x32xf32>
    %75 = tpu.matmul %72, %74, %cst_29 {dimension_numbers = #tpu.dot_dimension_numbers<[2], [1], [1], [2], [0, 0, 0, 1, 1, 2], [0], [0]>} : vector<4x8x8xbf16>, vector<4x8x32xbf16>, vector<4x8x32xf32> -> vector<4x8x32xf32>
    "tpu.trace_stop"() : () -> ()
    %cst_30 = arith.constant dense<0.000000e+00> : vector<8x32xf32>
    %76 = vector.multi_reduction <add>, %75, %cst_30 [0] : vector<4x8x32xf32> to vector<8x32xf32>
    %77 = vector.broadcast %9 : vector<1x32xf32> to vector<8x32xf32>
    %78 = arith.addf %76, %77 : vector<8x32xf32>
    %79 = arith.addf %12, %78 : vector<8x32xf32>
    %cst_31 = arith.constant dense<0.000000e+00> : vector<8xf32>
    %80 = vector.multi_reduction <add>, %79, %cst_31 [1] : vector<8x32xf32> to vector<8xf32>
    %81 = vector.shape_cast %80 : vector<8xf32> to vector<8x1xf32>
    %cst_32 = arith.constant 3.200000e+01 : f32
    %82 = vector.broadcast %cst_32 : f32 to vector<8x1xf32>
    %83 = arith.divf %81, %82 : vector<8x1xf32>
    %84 = vector.broadcast %83 : vector<8x1xf32> to vector<8x32xf32>
    %85 = arith.subf %79, %84 : vector<8x32xf32>
    %86 = arith.mulf %85, %85 : vector<8x32xf32>
    %cst_33 = arith.constant dense<0.000000e+00> : vector<8xf32>
    %87 = vector.multi_reduction <add>, %86, %cst_33 [1] : vector<8x32xf32> to vector<8xf32>
    %88 = vector.shape_cast %87 : vector<8xf32> to vector<8x1xf32>
    %cst_34 = arith.constant 3.200000e+01 : f32
    %89 = vector.broadcast %cst_34 : f32 to vector<8x1xf32>
    %90 = arith.divf %88, %89 : vector<8x1xf32>
    %91 = vector.broadcast %83 : vector<8x1xf32> to vector<8x32xf32>
    %92 = arith.subf %79, %91 : vector<8x32xf32>
    %cst_35 = arith.constant 9.99999974E-6 : f32
    %93 = vector.broadcast %cst_35 : f32 to vector<8x1xf32>
    %94 = arith.addf %90, %93 : vector<8x1xf32>
    %95 = math.rsqrt %94 : vector<8x1xf32>
    %96 = vector.broadcast %95 : vector<8x1xf32> to vector<8x32xf32>
    %97 = arith.mulf %92, %96 : vector<8x32xf32>
    %98 = vector.broadcast %7 : vector<1x32xf32> to vector<8x32xf32>
    %99 = arith.mulf %97, %98 : vector<8x32xf32>
    %100 = vector.broadcast %8 : vector<1x32xf32> to vector<8x32xf32>
    %101 = arith.addf %99, %100 : vector<8x32xf32>
    %102 = arith.truncf %101 : vector<8x32xf32> to vector<8x32xbf16>
    %c0_36 = arith.constant 0 : index
    %c0_37 = arith.constant 0 : index
    %c0_38 = arith.constant 0 : index
    %103 = vector.load %arg10[%c0_36, %c0_37, %c0_38] : memref<1x32x64xbf16, #tpu.memory_space<vmem>>, vector<1x32x64xbf16>
    %104 = vector.shape_cast %103 : vector<1x32x64xbf16> to vector<32x64xbf16>
    %cst_39 = arith.constant dense<0.000000e+00> : vector<8x64xf32>
    %105 = tpu.matmul %102, %104, %cst_39 {dimension_numbers = #tpu.dot_dimension_numbers<[1], [0], [0], [1], [0, 0, 1, 1], [], []>} : vector<8x32xbf16>, vector<32x64xbf16>, vector<8x64xf32> -> vector<8x64xf32>
    %c0_40 = arith.constant 0 : index
    %c0_41 = arith.constant 0 : index
    %c0_42 = arith.constant 0 : index
    %106 = vector.load %arg11[%c0_40, %c0_41, %c0_42] : memref<1x1x64xf32, #tpu.memory_space<vmem>>, vector<1x1x64xf32>
    %107 = vector.shape_cast %106 : vector<1x1x64xf32> to vector<1x64xf32>
    %108 = vector.broadcast %107 : vector<1x64xf32> to vector<8x64xf32>
    %109 = arith.addf %105, %108 : vector<8x64xf32>
    %cst_43 = arith.constant 1.702000e+00 : f32
    %110 = vector.broadcast %cst_43 : f32 to vector<8x64xf32>
    %111 = arith.mulf %110, %109 : vector<8x64xf32>
    %112 = arith.negf %111 : vector<8x64xf32>
    %113 = math.exp %112 : vector<8x64xf32>
    %cst_44 = arith.constant 1.000000e+00 : f32
    %114 = vector.broadcast %cst_44 : f32 to vector<8x64xf32>
    %115 = arith.addf %114, %113 : vector<8x64xf32>
    %116 = arith.divf %114, %115 : vector<8x64xf32>
    %117 = arith.mulf %109, %116 : vector<8x64xf32>
    %118 = arith.truncf %117 : vector<8x64xf32> to vector<8x64xbf16>
    %c0_45 = arith.constant 0 : index
    %c0_46 = arith.constant 0 : index
    %c0_47 = arith.constant 0 : index
    %119 = vector.load %arg12[%c0_45, %c0_46, %c0_47] : memref<1x64x32xbf16, #tpu.memory_space<vmem>>, vector<1x64x32xbf16>
    %120 = vector.shape_cast %119 : vector<1x64x32xbf16> to vector<64x32xbf16>
    %cst_48 = arith.constant dense<0.000000e+00> : vector<8x32xf32>
    %121 = tpu.matmul %118, %120, %cst_48 {dimension_numbers = #tpu.dot_dimension_numbers<[1], [0], [0], [1], [0, 0, 1, 1], [], []>} : vector<8x64xbf16>, vector<64x32xbf16>, vector<8x32xf32> -> vector<8x32xf32>
    %122 = vector.broadcast %10 : vector<1x32xf32> to vector<8x32xf32>
    %123 = arith.addf %121, %122 : vector<8x32xf32>
    %124 = arith.addf %79, %123 : vector<8x32xf32>
    %c0_49 = arith.constant 0 : index
    %c0_50 = arith.constant 0 : index
    %c0_51 = arith.constant 0 : index
    %125 = vector.load %arg13[%c0_49, %c0_50, %c0_51] : memref<1x8x32xf32, #tpu.memory_space<vmem>>, vector<1x8x32xf32>
    %126 = vector.shape_cast %125 : vector<1x8x32xf32> to vector<8x32xf32>
    %127 = vector.shape_cast %124 : vector<8x32xf32> to vector<1x8x32xf32>
    tpu.vector_store %arg13[%c0_49, %c0_50, %c0_51], %127 {strides = array<i32>} : memref<1x8x32xf32, #tpu.memory_space<vmem>>, vector<1x8x32xf32>,
    return
  }
  func.func @transform_0(%arg0: i32, %arg1: i32) -> (i32, i32, i32) {
    %c0_i32 = arith.constant 0 : i32
    %c0_i32_0 = arith.constant 0 : i32
    %c0_i32_1 = arith.constant 0 : i32
    return %arg0, %c0_i32, %c0_i32_0 : i32, i32, i32
  }
  func.func @transform_1(%arg0: i32, %arg1: i32) -> (i32, i32) {
    %c0_i32 = arith.constant 0 : i32
    %c0_i32_0 = arith.constant 0 : i32
    %c0_i32_1 = arith.constant 0 : i32
    return %c0_i32, %c0_i32_0 : i32, i32
  }
  func.func @transform_2(%arg0: i32, %arg1: i32) -> (i32, i32) {
    %c0_i32 = arith.constant 0 : i32
    %c0_i32_0 = arith.constant 0 : i32
    %c0_i32_1 = arith.constant 0 : i32
    return %c0_i32, %c0_i32_0 : i32, i32
  }
  func.func @transform_3(%arg0: i32, %arg1: i32) -> (i32, i32) {
    %c0_i32 = arith.constant 0 : i32
    %c0_i32_0 = arith.constant 0 : i32
    %c0_i32_1 = arith.constant 0 : i32
    return %c0_i32, %c0_i32_0 : i32, i32
  }
  func.func @transform_4(%arg0: i32, %arg1: i32) -> (i32, i32, i32) {
    %c0_i32 = arith.constant 0 : i32
    %c0_i32_0 = arith.constant 0 : i32
    %c0_i32_1 = arith.constant 0 : i32
    return %arg1, %c0_i32, %c0_i32_0 : i32, i32, i32
  }
  func.func @transform_5(%arg0: i32, %arg1: i32) -> (i32, i32, i32, i32) {
    %c0_i32 = arith.constant 0 : i32
    %c0_i32_0 = arith.constant 0 : i32
    %c0_i32_1 = arith.constant 0 : i32
    %c0_i32_2 = arith.constant 0 : i32
    return %arg1, %c0_i32, %c0_i32_0, %c0_i32_1 : i32, i32, i32, i32
  }
  func.func @transform_6(%arg0: i32, %arg1: i32) -> (i32, i32, i32, i32) {
    %c0_i32 = arith.constant 0 : i32
    %c0_i32_0 = arith.constant 0 : i32
    %c0_i32_1 = arith.constant 0 : i32
    %c0_i32_2 = arith.constant 0 : i32
    return %arg1, %c0_i32, %c0_i32_0, %c0_i32_1 : i32, i32, i32, i32
  }
  func.func @transform_7(%arg0: i32, %arg1: i32) -> (i32, i32, i32, i32) {
    %c0_i32 = arith.constant 0 : i32
    %c0_i32_0 = arith.constant 0 : i32
    %c0_i32_1 = arith.constant 0 : i32
    %c0_i32_2 = arith.constant 0 : i32
    return %arg1, %c0_i32, %c0_i32_0, %c0_i32_1 : i32, i32, i32, i32
  }
  func.func @transform_8(%arg0: i32, %arg1: i32) -> (i32, i32, i32) {
    %c0_i32 = arith.constant 0 : i32
    %c0_i32_0 = arith.constant 0 : i32
    %c0_i32_1 = arith.constant 0 : i32
    return %arg1, %c0_i32, %c0_i32_0 : i32, i32, i32
  }
  func.func @transform_9(%arg0: i32, %arg1: i32) -> (i32, i32, i32) {
    %c0_i32 = arith.constant 0 : i32
    %c0_i32_0 = arith.constant 0 : i32
    %c0_i32_1 = arith.constant 0 : i32
    return %arg1, %c0_i32, %c0_i32_0 : i32, i32, i32
  }
  func.func @transform_10(%arg0: i32, %arg1: i32) -> (i32, i32, i32) {
    %c0_i32 = arith.constant 0 : i32
    %c0_i32_0 = arith.constant 0 : i32
    %c0_i32_1 = arith.constant 0 : i32
    return %arg1, %c0_i32, %c0_i32_0 : i32, i32, i32
  }
  func.func @transform_11(%arg0: i32, %arg1: i32) -> (i32, i32, i32) {
    %c0_i32 = arith.constant 0 : i32
    %c0_i32_0 = arith.constant 0 : i32
    %c0_i32_1 = arith.constant 0 : i32
    return %arg0, %c0_i32, %c0_i32_0 : i32, i32, i32
  }
}

</mosaic_0001>

<llo_original>
// kernel: vision_tower_forward.1
$region0: #{vision_tower_forward.1}
  #allocation0 [shape = 'u32[]', space=smem, size = 0x4, offset = 0x4, fixed_abs, tag = 'smem constant byte address 0x4 - core index']
  #allocation1 [shape = 'u32[72,128]{1,0:T(1,128)}', space=vmem, size = 0x9000, scoped, tag = 'internal scratch']
  %s0 = inlined_call_operand.vmem [shape: bf16[2,8,192], index: 0, kind: input, shape index: {}]
  %s1 = inlined_call_operand.vmem [shape: bf16[192,32], index: 1, kind: input, shape index: {}]
  %s2 = inlined_call_operand.vmem [shape: f32[8,32], index: 2, kind: input, shape index: {}]
  %s3 = inlined_call_operand.vmem [shape: f32[2,32], index: 3, kind: input, shape index: {}]
  %s4 = inlined_call_operand.vmem [shape: f32[2,6,32], index: 4, kind: input, shape index: {}]
  %s5 = inlined_call_operand.vmem [shape: bf16[2,4,32,24], index: 5, kind: input, shape index: {}]
  %s6 = inlined_call_operand.vmem [shape: f32[2,4,1,24], index: 6, kind: input, shape index: {}]
  %s7 = inlined_call_operand.vmem [shape: bf16[2,4,8,32], index: 7, kind: input, shape index: {}]
  %s8 = inlined_call_operand.vmem [shape: bf16[2,32,64], index: 8, kind: input, shape index: {}]
  %s9 = inlined_call_operand.vmem [shape: f32[2,1,64], index: 9, kind: input, shape index: {}]
  %s10 = inlined_call_operand.vmem [shape: bf16[2,64,32], index: 10, kind: input, shape index: {}]
  %s11 = inlined_call_operand.vmem [shape: f32[2,8,32], index: 11, kind: output, shape index: {}]
  %s12 = sld [smem:[#allocation0]]
  $region81: #{vision_tower_forward.1} parent=0
    _
  %s14 = ssub.s32 1, %s12
  %s15 = scalar_select 0, %s14, %s12
  loop: start=0, step=1, limit=6
  $region2: #{vision_tower_forward.1} parent=0 // loop_pre_header
    _
  $region3: #{vision_tower_forward.1} parent=0 // loop_header
    %s17 = sphi 0, %s21
    %p18 = scmp.ge.s32.totalorder %s17, 6
    %s24 = sphi 0, %s36
    %s25 = sphi 0, %s32
    %s26 = sphi 0, %s24
    %s27 = sphi 0, %s25
    %s28 = sphi 0, %s26
    %s29 = sphi 0, %s27
    %s39 = sphi 0, %s41
    %s42 = sphi 0, %s39
    %s43 = sphi 0, %s42
    %s59 = sphi 0, %s43
    %s63 = sphi 0, %s63
    %s65 = sphi 0, %s63
    %s66 = sphi 0, %s65
    %s80 = sphi 0, %s66
    %s84 = sphi 0, %s84
    %s86 = sphi 0, %s84
    %s87 = sphi 0, %s86
    %s101 = sphi 0, %s87
    %s105 = sphi 0, %s105
    %s107 = sphi 0, %s105
    %s108 = sphi 0, %s107
    %s122 = sphi 0, %s108
    %s128 = sphi 0, %s130
    %s131 = sphi 0, %s128
    %s132 = sphi 0, %s131
    %s148 = sphi 0, %s132
    %s154 = sphi 0, %s156
    %s157 = sphi 0, %s154
    %s158 = sphi 0, %s157
    %s174 = sphi 0, %s158
    %s180 = sphi 0, %s182
    %s183 = sphi 0, %s180
    %s184 = sphi 0, %s183
    %s200 = sphi 0, %s184
    %s206 = sphi 0, %s208
    %s209 = sphi 0, %s206
    %s210 = sphi 0, %s209
    %s226 = sphi 0, %s210
    %s232 = sphi 0, %s234
    %s235 = sphi 0, %s232
    %s236 = sphi 0, %s235
    %s252 = sphi 0, %s236
    %s258 = sphi 0, %s260
    %s261 = sphi 0, %s258
    %s262 = sphi 0, %s261
    %s278 = sphi 0, %s262
    %s284 = sphi 0, %s286
    %s287 = sphi 0, %s284
    %s288 = sphi 0, %s287
    %s304 = sphi 0, %s288
    %s310 = sphi 0, %s312
    %s313 = sphi 0, %s310
    %s314 = sphi 0, %s313
    %s330 = sphi 0, %s314
  $region4: #{vision_tower_forward.1} parent=0 // loop_header_branch
    %20 = sbr.rel (%p18) target = $region8
  $region5: #{vision_tower_forward.1} parent=0 // loop_body
    %s22 = ssub.s32 %s17, 1
    %s23 = ssub.s32 %s17, 2
    %s30 = sadd.s32 1, %s25
    %p31 = scmp.ge.s32.totalorder %s30, 2
    %s32 = scalar_select %p31, 0, %s30
    %s33 = sadd.s32 1, %s24
    %s34 = scalar_select %p31, %s33, %s24
    %p35 = scmp.ge.s32.totalorder %s34, 2
    %s36 = scalar_select %p35, 0, %s34
    %s37 = ssub.s32 %s24, %s36
    %p38 = scmp.eq.s32.totalorder %s37, 0
    %s40 = sadd.s32 %s39, 1
    %s41 = scalar_select %p38, %s39, %s40
    %p44 = pneg %p38
    %p45 = scmp.eq.s32.totalorder %s17, 3
    %p46 = por %p44, %p45
    %p47 = scmp.ne.s32.totalorder %s39, %s42
    %p48 = scmp.eq.s32.totalorder %s17, 0
    %p49 = por %p47, %p48
    %p50 = scmp.ne.s32.totalorder %s39, %s42
    %p51 = scmp.eq.s32.totalorder %s22, 3
    %p52 = por %p50, %p51
    %p53 = scmp.ne.s32.totalorder %s42, %s43
    %p54 = scmp.eq.s32.totalorder %s22, 0
    %p55 = por %p53, %p54
    %p56 = scmp.ne.s32.totalorder %s42, %s43
    %p57 = scmp.eq.s32.totalorder %s23, 3
    %p58 = por %p56, %p57
    %p60 = scmp.ne.s32.totalorder %s43, %s59
    %p61 = scmp.eq.s32.totalorder %s23, 0
    %p62 = por %p60, %p61
    %s64 = sadd.s32 %s63, 1
    %p67 = scmp.eq.s32.totalorder %s17, 3
    %p68 = scmp.ne.s32.totalorder %s63, %s65
    %p69 = scmp.eq.s32.totalorder %s17, 0
    %p70 = por %p68, %p69
    %p71 = scmp.ne.s32.totalorder %s63, %s65
    %p72 = scmp.eq.s32.totalorder %s22, 3
    %p73 = por %p71, %p72
    %p74 = scmp.ne.s32.totalorder %s65, %s66
    %p75 = scmp.eq.s32.totalorder %s22, 0
    %p76 = por %p74, %p75
    %p77 = scmp.ne.s32.totalorder %s65, %s66
    %p78 = scmp.eq.s32.totalorder %s23, 3
    %p79 = por %p77, %p78
    %p81 = scmp.ne.s32.totalorder %s66, %s80
    %p82 = scmp.eq.s32.totalorder %s23, 0
    %p83 = por %p81, %p82
    %s85 = sadd.s32 %s84, 1
    %p88 = scmp.eq.s32.totalorder %s17, 3
    %p89 = scmp.ne.s32.totalorder %s84, %s86
    %p90 = scmp.eq.s32.totalorder %s17, 0
    %p91 = por %p89, %p90
    %p92 = scmp.ne.s32.totalorder %s84, %s86
    %p93 = scmp.eq.s32.totalorder %s22, 3
    %p94 = por %p92, %p93
    %p95 = scmp.ne.s32.totalorder %s86, %s87
    %p96 = scmp.eq.s32.totalorder %s22, 0
    %p97 = por %p95, %p96
    %p98 = scmp.ne.s32.totalorder %s86, %s87
    %p99 = scmp.eq.s32.totalorder %s23, 3
    %p100 = por %p98, %p99
    %p102 = scmp.ne.s32.totalorder %s87, %s101
    %p103 = scmp.eq.s32.totalorder %s23, 0
    %p104 = por %p102, %p103
    %s106 = sadd.s32 %s105, 1
    %p109 = scmp.eq.s32.totalorder %s17, 3
    %p110 = scmp.ne.s32.totalorder %s105, %s107
    %p111 = scmp.eq.s32.totalorder %s17, 0
    %p112 = por %p110, %p111
    %p113 = scmp.ne.s32.totalorder %s105, %s107
    %p114 = scmp.eq.s32.totalorder %s22, 3
    %p115 = por %p113, %p114
    %p116 = scmp.ne.s32.totalorder %s107, %s108
    %p117 = scmp.eq.s32.totalorder %s22, 0
    %p118 = por %p116, %p117
    %p119 = scmp.ne.s32.totalorder %s107, %s108
    %p120 = scmp.eq.s32.totalorder %s23, 3
    %p121 = por %p119, %p120
    %p123 = scmp.ne.s32.totalorder %s108, %s122
    %p124 = scmp.eq.s32.totalorder %s23, 0
    %p125 = por %p123, %p124
    %s126 = ssub.s32 %s25, %s32
    %p127 = scmp.eq.s32.totalorder %s126, 0
    %s129 = sadd.s32 %s128, 1
    %s130 = scalar_select %p127, %s128, %s129
    %p133 = pneg %p127
    %p134 = scmp.eq.s32.totalorder %s17, 3
    %p135 = por %p133, %p134
    %p136 = scmp.ne.s32.totalorder %s128, %s131
    %p137 = scmp.eq.s32.totalorder %s17, 0
    %p138 = por %p136, %p137
    %p139 = scmp.ne.s32.totalorder %s128, %s131
    %p140 = scmp.eq.s32.totalorder %s22, 3
    %p141 = por %p139, %p140
    %p142 = scmp.ne.s32.totalorder %s131, %s132
    %p143 = scmp.eq.s32.totalorder %s22, 0
    %p144 = por %p142, %p143
    %p145 = scmp.ne.s32.totalorder %s131, %s132
    %p146 = scmp.eq.s32.totalorder %s23, 3
    %p147 = por %p145, %p146
    %p149 = scmp.ne.s32.totalorder %s132, %s148
    %p150 = scmp.eq.s32.totalorder %s23, 0
    %p151 = por %p149, %p150
    %s152 = ssub.s32 %s25, %s32
    %p153 = scmp.eq.s32.totalorder %s152, 0
    %s155 = sadd.s32 %s154, 1
    %s156 = scalar_select %p153, %s154, %s155
    %p159 = pneg %p153
    %p160 = scmp.eq.s32.totalorder %s17, 3
    %p161 = por %p159, %p160
    %p162 = scmp.ne.s32.totalorder %s154, %s157
    %p163 = scmp.eq.s32.totalorder %s17, 0
    %p164 = por %p162, %p163
    %p165 = scmp.ne.s32.totalorder %s154, %s157
    %p166 = scmp.eq.s32.totalorder %s22, 3
    %p167 = por %p165, %p166
    %p168 = scmp.ne.s32.totalorder %s157, %s158
    %p169 = scmp.eq.s32.totalorder %s22, 0
    %p170 = por %p168, %p169
    %p171 = scmp.ne.s32.totalorder %s157, %s158
    %p172 = scmp.eq.s32.totalorder %s23, 3
    %p173 = por %p171, %p172
    %p175 = scmp.ne.s32.totalorder %s158, %s174
    %p176 = scmp.eq.s32.totalorder %s23, 0
    %p177 = por %p175, %p176
    %s178 = ssub.s32 %s25, %s32
    %p179 = scmp.eq.s32.totalorder %s178, 0
    %s181 = sadd.s32 %s180, 1
    %s182 = scalar_select %p179, %s180, %s181
    %p185 = pneg %p179
    %p186 = scmp.eq.s32.totalorder %s17, 3
    %p187 = por %p185, %p186
    %p188 = scmp.ne.s32.totalorder %s180, %s183
    %p189 = scmp.eq.s32.totalorder %s17, 0
    %p190 = por %p188, %p189
    %p191 = scmp.ne.s32.totalorder %s180, %s183
    %p192 = scmp.eq.s32.totalorder %s22, 3
    %p193 = por %p191, %p192
    %p194 = scmp.ne.s32.totalorder %s183, %s184
    %p195 = scmp.eq.s32.totalorder %s22, 0
    %p196 = por %p194, %p195
    %p197 = scmp.ne.s32.totalorder %s183, %s184
    %p198 = scmp.eq.s32.totalorder %s23, 3
    %p199 = por %p197, %p198
    %p201 = scmp.ne.s32.totalorder %s184, %s200
    %p202 = scmp.eq.s32.totalorder %s23, 0
    %p203 = por %p201, %p202
    %s204 = ssub.s32 %s25, %s32
    %p205 = scmp.eq.s32.totalorder %s204, 0
    %s207 = sadd.s32 %s206, 1
    %s208 = scalar_select %p205, %s206, %s207
    %p211 = pneg %p205
    %p212 = scmp.eq.s32.totalorder %s17, 3
    %p213 = por %p211, %p212
    %p214 = scmp.ne.s32.totalorder %s206, %s209
    %p215 = scmp.eq.s32.totalorder %s17, 0
    %p216 = por %p214, %p215
    %p217 = scmp.ne.s32.totalorder %s206, %s209
    %p218 = scmp.eq.s32.totalorder %s22, 3
    %p219 = por %p217, %p218
    %p220 = scmp.ne.s32.totalorder %s209, %s210
    %p221 = scmp.eq.s32.totalorder %s22, 0
    %p222 = por %p220, %p221
    %p223 = scmp.ne.s32.totalorder %s209, %s210
    %p224 = scmp.eq.s32.totalorder %s23, 3
    %p225 = por %p223, %p224
    %p227 = scmp.ne.s32.totalorder %s210, %s226
    %p228 = scmp.eq.s32.totalorder %s23, 0
    %p229 = por %p227, %p228
    %s230 = ssub.s32 %s25, %s32
    %p231 = scmp.eq.s32.totalorder %s230, 0
    %s233 = sadd.s32 %s232, 1
    %s234 = scalar_select %p231, %s232, %s233
    %p237 = pneg %p231
    %p238 = scmp.eq.s32.totalorder %s17, 3
    %p239 = por %p237, %p238
    %p240 = scmp.ne.s32.totalorder %s232, %s235
    %p241 = scmp.eq.s32.totalorder %s17, 0
    %p242 = por %p240, %p241
    %p243 = scmp.ne.s32.totalorder %s232, %s235
    %p244 = scmp.eq.s32.totalorder %s22, 3
    %p245 = por %p243, %p244
    %p246 = scmp.ne.s32.totalorder %s235, %s236
    %p247 = scmp.eq.s32.totalorder %s22, 0
    %p248 = por %p246, %p247
    %p249 = scmp.ne.s32.totalorder %s235, %s236
    %p250 = scmp.eq.s32.totalorder %s23, 3
    %p251 = por %p249, %p250
    %p253 = scmp.ne.s32.totalorder %s236, %s252
    %p254 = scmp.eq.s32.totalorder %s23, 0
    %p255 = por %p253, %p254
    %s256 = ssub.s32 %s25, %s32
    %p257 = scmp.eq.s32.totalorder %s256, 0
    %s259 = sadd.s32 %s258, 1
    %s260 = scalar_select %p257, %s258, %s259
    %p263 = pneg %p257
    %p264 = scmp.eq.s32.totalorder %s17, 3
    %p265 = por %p263, %p264
    %p266 = scmp.ne.s32.totalorder %s258, %s261
    %p267 = scmp.eq.s32.totalorder %s17, 0
    %p268 = por %p266, %p267
    %p269 = scmp.ne.s32.totalorder %s258, %s261
    %p270 = scmp.eq.s32.totalorder %s22, 3
    %p271 = por %p269, %p270
    %p272 = scmp.ne.s32.totalorder %s261, %s262
    %p273 = scmp.eq.s32.totalorder %s22, 0
    %p274 = por %p272, %p273
    %p275 = scmp.ne.s32.totalorder %s261, %s262
    %p276 = scmp.eq.s32.totalorder %s23, 3
    %p277 = por %p275, %p276
    %p279 = scmp.ne.s32.totalorder %s262, %s278
    %p280 = scmp.eq.s32.totalorder %s23, 0
    %p281 = por %p279, %p280
    %s282 = ssub.s32 %s25, %s32
    %p283 = scmp.eq.s32.totalorder %s282, 0
    %s285 = sadd.s32 %s284, 1
    %s286 = scalar_select %p283, %s284, %s285
    %p289 = pneg %p283
    %p290 = scmp.eq.s32.totalorder %s17, 3
    %p291 = por %p289, %p290
    %p292 = scmp.ne.s32.totalorder %s284, %s287
    %p293 = scmp.eq.s32.totalorder %s17, 0
    %p294 = por %p292, %p293
    %p295 = scmp.ne.s32.totalorder %s284, %s287
    %p296 = scmp.eq.s32.totalorder %s22, 3
    %p297 = por %p295, %p296
    %p298 = scmp.ne.s32.totalorder %s287, %s288
    %p299 = scmp.eq.s32.totalorder %s22, 0
    %p300 = por %p298, %p299
    %p301 = scmp.ne.s32.totalorder %s287, %s288
    %p302 = scmp.eq.s32.totalorder %s23, 3
    %p303 = por %p301, %p302
    %p305 = scmp.ne.s32.totalorder %s288, %s304
    %p306 = scmp.eq.s32.totalorder %s23, 0
    %p307 = por %p305, %p306
    %s308 = ssub.s32 %s24, %s36
    %p309 = scmp.eq.s32.totalorder %s308, 0
    %s311 = sadd.s32 %s310, 1
    %s312 = scalar_select %p309, %s310, %s311
    %p315 = pneg %p309
    %p316 = scmp.eq.s32.totalorder %s17, 3
    %p317 = por %p315, %p316
    %p318 = scmp.ne.s32.totalorder %s310, %s313
    %p319 = scmp.eq.s32.totalorder %s17, 0
    %p320 = por %p318, %p319
    %p321 = scmp.ne.s32.totalorder %s310, %s313
    %p322 = scmp.eq.s32.totalorder %s22, 3
    %p323 = por %p321, %p322
    %p324 = scmp.ne.s32.totalorder %s313, %s314
    %p325 = scmp.eq.s32.totalorder %s22, 0
    %p326 = por %p324, %p325
    %p327 = scmp.ne.s32.totalorder %s313, %s314
    %p328 = scmp.eq.s32.totalorder %s23, 3
    %p329 = por %p327, %p328
    %p331 = scmp.ne.s32.totalorder %s314, %s330
    %p332 = scmp.eq.s32.totalorder %s23, 0
    %p333 = por %p331, %p332
    %p334 = scmp.le.s32.totalorder 1, %s17
    %p335 = scmp.lt.s32.totalorder %s17, 5
    %p336 = pnand %p334, %p335
    %p337 = pneg %p336
    // Predicated region
    $region9: #{vision_tower_forward.1} parent=5 // pred_check
      _
    $region10: #{vision_tower_forward.1} parent=5 // pred_check_branch
      %339 = sbr.rel (%p336) target = $region12
    $region11: #{vision_tower_forward.1} parent=5 // pred_region
      %s340 = ssub.s32 %s17, 1
      // Predicated region
      $region13: #{vision_tower_forward.1} parent=11 // pred_check
        %p341 = pneg %p76
      $region14: #{vision_tower_forward.1} parent=11 // pred_check_branch
        %343 = sbr.rel (%p341) target = $region16
      $region15: #{vision_tower_forward.1} parent=11 // pred_region
        _
      $region16: #{vision_tower_forward.1} parent=11 // pred_fallthru
        _
      // Predicated region
      $region17: #{vision_tower_forward.1} parent=11 // pred_check
        %p344 = pneg %p97
      $region18: #{vision_tower_forward.1} parent=11 // pred_check_branch
        %346 = sbr.rel (%p344) target = $region20
      $region19: #{vision_tower_forward.1} parent=11 // pred_region
        _
      $region20: #{vision_tower_forward.1} parent=11 // pred_fallthru
        _
      // Predicated region
      $region21: #{vision_tower_forward.1} parent=11 // pred_check
        %p347 = pneg %p118
      $region22: #{vision_tower_forward.1} parent=11 // pred_check_branch
        %349 = sbr.rel (%p347) target = $region24
      $region23: #{vision_tower_forward.1} parent=11 // pred_region
        _
      $region24: #{vision_tower_forward.1} parent=11 // pred_fallthru
        _
    $region12: #{vision_tower_forward.1} parent=5 // pred_fallthru
      _
    %p350 = scmp.lt.s32.totalorder %s17, 4
    // Predicated region
    $region25: #{vision_tower_forward.1} parent=5 // pred_check
      %p351 = pneg %p350
    $region26: #{vision_tower_forward.1} parent=5 // pred_check_branch
      %353 = sbr.rel (%p351) target = $region28
    $region27: #{vision_tower_forward.1} parent=5 // pred_region
      // Predicated region
      $region29: #{vision_tower_forward.1} parent=27 // pred_check
        %p354 = pneg %p49
      $region30: #{vision_tower_forward.1} parent=27 // pred_check_branch
        %356 = sbr.rel (%p354) target = $region32
      $region31: #{vision_tower_forward.1} parent=27 // pred_region
        %p357 = scmp.lt.s32.totalorder %s24, 1
        %s358 = scalar_select %p357, %s24, 1
        %s359 = smul.addr %s358, 2
        %s360 = smul.addr %s359, 4
        %s361 = scalar_lea.vmem %s0, %s360
      $region32: #{vision_tower_forward.1} parent=27 // pred_fallthru
        _
      // Predicated region
      $region33: #{vision_tower_forward.1} parent=27 // pred_check
        %p362 = pneg %p138
      $region34: #{vision_tower_forward.1} parent=27 // pred_check_branch
        %364 = sbr.rel (%p362) target = $region36
      $region35: #{vision_tower_forward.1} parent=27 // pred_region
        %p365 = scmp.lt.s32.totalorder %s25, 1
        %s366 = scalar_select %p365, %s25, 1
        %s367 = smul.addr %s366, 8
        %s368 = scalar_lea.vmem %s4, %s367
      $region36: #{vision_tower_forward.1} parent=27 // pred_fallthru
        _
      // Predicated region
      $region37: #{vision_tower_forward.1} parent=27 // pred_check
        %p369 = pneg %p164
      $region38: #{vision_tower_forward.1} parent=27 // pred_check_branch
        %371 = sbr.rel (%p369) target = $region40
      $region39: #{vision_tower_forward.1} parent=27 // pred_region
        %p372 = scmp.lt.s32.totalorder %s25, 1
        %s373 = scalar_select %p372, %s25, 1
        %s374 = smul.addr %s373, 16
        %s375 = smul.addr %s374, 4
        %s376 = scalar_lea.vmem %s5, %s375
      $region40: #{vision_tower_forward.1} parent=27 // pred_fallthru
        _
      // Predicated region
      $region41: #{vision_tower_forward.1} parent=27 // pred_check
        %p377 = pneg %p190
      $region42: #{vision_tower_forward.1} parent=27 // pred_check_branch
        %379 = sbr.rel (%p377) target = $region44
      $region43: #{vision_tower_forward.1} parent=27 // pred_region
        %p380 = scmp.lt.s32.totalorder %s25, 1
        %s381 = scalar_select %p380, %s25, 1
        %s382 = smul.addr %s381, 4
        %s383 = scalar_lea.vmem %s6, %s382
      $region44: #{vision_tower_forward.1} parent=27 // pred_fallthru
        _
      // Predicated region
      $region45: #{vision_tower_forward.1} parent=27 // pred_check
        %p384 = pneg %p216
      $region46: #{vision_tower_forward.1} parent=27 // pred_check_branch
        %386 = sbr.rel (%p384) target = $region48
      $region47: #{vision_tower_forward.1} parent=27 // pred_region
        %p387 = scmp.lt.s32.totalorder %s25, 1
        %s388 = scalar_select %p387, %s25, 1
        %s389 = smul.addr %s388, 4
        %s390 = smul.addr %s389, 4
        %s391 = scalar_lea.vmem %s7, %s390
      $region48: #{vision_tower_forward.1} parent=27 // pred_fallthru
        _
      // Predicated region
      $region49: #{vision_tower_forward.1} parent=27 // pred_check
        %p392 = pneg %p242
      $region50: #{vision_tower_forward.1} parent=27 // pred_check_branch
        %394 = sbr.rel (%p392) target = $region52
      $region51: #{vision_tower_forward.1} parent=27 // pred_region
        %p395 = scmp.lt.s32.totalorder %s25, 1
        %s396 = scalar_select %p395, %s25, 1
        %s397 = smul.addr %s396, 4
        %s398 = smul.addr %s397, 4
        %s399 = scalar_lea.vmem %s8, %s398
      $region52: #{vision_tower_forward.1} parent=27 // pred_fallthru
        _
      // Predicated region
      $region53: #{vision_tower_forward.1} parent=27 // pred_check
        %p400 = pneg %p268
      $region54: #{vision_tower_forward.1} parent=27 // pred_check_branch
        %402 = sbr.rel (%p400) target = $region56
      $region55: #{vision_tower_forward.1} parent=27 // pred_region
        %p403 = scmp.lt.s32.totalorder %s25, 1
        %s404 = scalar_select %p403, %s25, 1
        %s405 = scalar_lea.vmem %s9, %s404
      $region56: #{vision_tower_forward.1} parent=27 // pred_fallthru
        _
      // Predicated region
      $region57: #{vision_tower_forward.1} parent=27 // pred_check
        %p406 = pneg %p294
      $region58: #{vision_tower_forward.1} parent=27 // pred_check_branch
        %408 = sbr.rel (%p406) target = $region60
      $region59: #{vision_tower_forward.1} parent=27 // pred_region
        %p409 = scmp.lt.s32.totalorder %s25, 1
        %s410 = scalar_select %p409, %s25, 1
        %s411 = smul.addr %s410, 8
        %s412 = smul.addr %s411, 4
        %s413 = scalar_lea.vmem %s10, %s412
      $region60: #{vision_tower_forward.1} parent=27 // pred_fallthru
        _
    $region28: #{vision_tower_forward.1} parent=5 // pred_fallthru
      _
    %p414 = scmp.le.s32.totalorder 1, %s17
    %p415 = scmp.lt.s32.totalorder %s17, 5
    %p416 = pnand %p414, %p415
    %p417 = pneg %p416
    // Predicated region
    $region61: #{vision_tower_forward.1} parent=5 // pred_check
      _
    $region62: #{vision_tower_forward.1} parent=5 // pred_check_branch
      %419 = sbr.rel (%p416) target = $region64
    $region63: #{vision_tower_forward.1} parent=5 // pred_region
      %s420 = ssub.s32 %s17, 1
      %p421 = scmp.lt.s32.totalorder %s26, 1
      %s422 = scalar_select %p421, %s26, 1
      %s423 = smul.addr %s422, 2
      %s424 = smul.addr %s423, 4
      %s425 = scalar_lea.vmem %s0, %s424
      %p426 = pneg %p55
      %p427 = pneg %p52
      %p428 = pneg %p76
      %p429 = pneg %p73
      %p430 = pneg %p97
      %p431 = pneg %p94
      %p432 = pneg %p118
      %p433 = pneg %p115
      %p434 = scmp.lt.s32.totalorder %s27, 1
      %s435 = scalar_select %p434, %s27, 1
      %s436 = smul.addr %s435, 8
      %s437 = scalar_lea.vmem %s4, %s436
      %p438 = pneg %p144
      %p439 = pneg %p141
      %p440 = scmp.lt.s32.totalorder %s27, 1
      %s441 = scalar_select %p440, %s27, 1
      %s442 = smul.addr %s441, 16
      %s443 = smul.addr %s442, 4
      %s444 = scalar_lea.vmem %s5, %s443
      %p445 = pneg %p170
      %p446 = pneg %p167
      %p447 = scmp.lt.s32.totalorder %s27, 1
      %s448 = scalar_select %p447, %s27, 1
      %s449 = smul.addr %s448, 4
      %s450 = scalar_lea.vmem %s6, %s449
      %p451 = pneg %p196
      %p452 = pneg %p193
      %p453 = scmp.lt.s32.totalorder %s27, 1
      %s454 = scalar_select %p453, %s27, 1
      %s455 = smul.addr %s454, 4
      %s456 = smul.addr %s455, 4
      %s457 = scalar_lea.vmem %s7, %s456
      %p458 = pneg %p222
      %p459 = pneg %p219
      %p460 = scmp.lt.s32.totalorder %s27, 1
      %s461 = scalar_select %p460, %s27, 1
      %s462 = smul.addr %s461, 4
      %s463 = smul.addr %s462, 4
      %s464 = scalar_lea.vmem %s8, %s463
      %p465 = pneg %p248
      %p466 = pneg %p245
      %p467 = scmp.lt.s32.totalorder %s27, 1
      %s468 = scalar_select %p467, %s27, 1
      %s469 = scalar_lea.vmem %s9, %s468
      %p470 = pneg %p274
      %p471 = pneg %p271
      %p472 = scmp.lt.s32.totalorder %s27, 1
      %s473 = scalar_select %p472, %s27, 1
      %s474 = smul.addr %s473, 8
      %s475 = smul.addr %s474, 4
      %s476 = scalar_lea.vmem %s10, %s475
      %p477 = pneg %p300
      %p478 = pneg %p297
      %p479 = pneg %p326
      %p480 = pneg %p323
      %p481 = scmp.lt.s32.totalorder %s26, 1
      %s482 = scalar_select %p481, %s26, 1
      %s483 = smul.addr %s482, 8
      %s484 = scalar_lea.vmem %s11, %s483
      %p485 = scmp.lt.s32.totalorder %s26, 1
      %s486 = scalar_select %p485, %s26, 1
      %s487 = smul.addr %s486, 2
      %s488 = smul.addr %s487, 4
      %s489 = scalar_lea.vmem %s0, %s488
      %p490 = scmp.lt.s32.totalorder %s27, 1
      %s491 = scalar_select %p490, %s27, 1
      %s492 = smul.addr %s491, 8
      %s493 = scalar_lea.vmem %s4, %s492
      %p494 = scmp.lt.s32.totalorder %s27, 1
      %s495 = scalar_select %p494, %s27, 1
      %s496 = smul.addr %s495, 16
      %s497 = smul.addr %s496, 4
      %s498 = scalar_lea.vmem %s5, %s497
      %p499 = scmp.lt.s32.totalorder %s27, 1
      %s500 = scalar_select %p499, %s27, 1
      %s501 = smul.addr %s500, 4
      %s502 = scalar_lea.vmem %s6, %s501
      %p503 = scmp.lt.s32.totalorder %s27, 1
      %s504 = scalar_select %p503, %s27, 1
      %s505 = smul.addr %s504, 4
      %s506 = smul.addr %s505, 4
      %s507 = scalar_lea.vmem %s7, %s506
      %p508 = scmp.lt.s32.totalorder %s27, 1
      %s509 = scalar_select %p508, %s27, 1
      %s510 = smul.addr %s509, 4
      %s511 = smul.addr %s510, 4
      %s512 = scalar_lea.vmem %s8, %s511
      %p513 = scmp.lt.s32.totalorder %s27, 1
      %s514 = scalar_select %p513, %s27, 1
      %s515 = scalar_lea.vmem %s9, %s514
      %p516 = scmp.lt.s32.totalorder %s27, 1
      %s517 = scalar_select %p516, %s27, 1
      %s518 = smul.addr %s517, 8
      %s519 = smul.addr %s518, 4
      %s520 = scalar_lea.vmem %s10, %s519
      %p521 = scmp.lt.s32.totalorder %s26, 1
      %s522 = scalar_select %p521, %s26, 1
      %s523 = smul.addr %s522, 8
      %s524 = scalar_lea.vmem %s11, %s523
      %p526 = scmp.eq.s32.totalorder %s27, 0
      // Predicated region
      $region65: #{vision_tower_forward.1} parent=63 // pred_check
        %p527 = pneg %p526
      $region66: #{vision_tower_forward.1} parent=63 // pred_check_branch
        %529 = sbr.rel (%p527) target = $region68
      $region67: #{vision_tower_forward.1} parent=63 // pred_region
        %v530 = vld [vmem:[%s489] sm:$0xff]
        %v531 = vld [vmem:[%s1] sm:$0xf]
        %v532 = vld [vmem:[%s1 + $0x4] sm:$0xf]
        %v533 = vld [vmem:[%s1 + $0x8] sm:$0xf]
        %v534 = vld [vmem:[%s1 + $0xc] sm:$0xf]
        %v535 = vld [vmem:[%s1 + $0x10] sm:$0xf]
        %v536 = vld [vmem:[%s1 + $0x14] sm:$0xf]
        %v537 = vld [vmem:[%s1 + $0x18] sm:$0xf]
        %v538 = vld [vmem:[%s1 + $0x1c] sm:$0xf]
        %v539 = vld [vmem:[%s1 + $0x20] sm:$0xf]
        %v540 = vld [vmem:[%s1 + $0x24] sm:$0xf]
        %v541 = vld [vmem:[%s1 + $0x28] sm:$0xf]
        %v542 = vld [vmem:[%s1 + $0x2c] sm:$0xf]
        %v543 = vld [vmem:[%s1 + $0x30] sm:$0xf]
        %v544 = vld [vmem:[%s1 + $0x34] sm:$0xf]
        %v545 = vld [vmem:[%s1 + $0x38] sm:$0xf]
        %v546 = vld [vmem:[%s1 + $0x3c] sm:$0xf]
        %v547 = vld [vmem:[%s1 + $0x40] sm:$0xf]
        %v548 = vld [vmem:[%s1 + $0x44] sm:$0xf]
        %v549 = vld [vmem:[%s1 + $0x48] sm:$0xf]
        %v550 = vld [vmem:[%s1 + $0x4c] sm:$0xf]
        %v551 = vld [vmem:[%s1 + $0x50] sm:$0xf]
        %v552 = vld [vmem:[%s1 + $0x54] sm:$0xf]
        %v553 = vld [vmem:[%s1 + $0x58] sm:$0xf]
        %v554 = vld [vmem:[%s1 + $0x5c] sm:$0xf]
        %v556 = vunpack.c.l.b16 %v530
        %v557 = vunpack.c.h.b16 %v530
        %v558 = vpack.c.b16 %v556, %v556
        %v559 = vpack.c.b16 %v557, %v557
        %v585 = vunpack.c.l.b16 %v531
        %v586 = vunpack.c.l.b16 %v532
        %v587 = vunpack.c.l.b16 %v533
        %v588 = vunpack.c.l.b16 %v534
        %v589 = vunpack.c.l.b16 %v535
        %v590 = vunpack.c.l.b16 %v536
        %v591 = vunpack.c.l.b16 %v537
        %v592 = vunpack.c.l.b16 %v538
        %v593 = vunpack.c.l.b16 %v539
        %v594 = vunpack.c.l.b16 %v540
        %v595 = vunpack.c.l.b16 %v541
        %v596 = vunpack.c.l.b16 %v542
        %v597 = vunpack.c.l.b16 %v543
        %v598 = vunpack.c.l.b16 %v544
        %v599 = vunpack.c.l.b16 %v545
        %v600 = vunpack.c.l.b16 %v546
        %v601 = vunpack.c.l.b16 %v547
        %v602 = vunpack.c.l.b16 %v548
        %v603 = vunpack.c.l.b16 %v549
        %v604 = vunpack.c.l.b16 %v550
        %v605 = vunpack.c.l.b16 %v551
        %v606 = vunpack.c.l.b16 %v552
        %v607 = vunpack.c.l.b16 %v553
        %v608 = vunpack.c.l.b16 %v554
        %v609 = vpack.c.b16 %v586, %v585
        %v610 = vpack.c.b16 %v588, %v587
        %v611 = vpack.c.b16 %v590, %v589
        %v612 = vpack.c.b16 %v592, %v591
        %v613 = vpack.c.b16 %v594, %v593
        %v614 = vpack.c.b16 %v596, %v595
        %v615 = vpack.c.b16 %v598, %v597
        %v616 = vpack.c.b16 %v600, %v599
        %v617 = vpack.c.b16 %v602, %v601
        %v618 = vpack.c.b16 %v604, %v603
        %v619 = vpack.c.b16 %v606, %v605
        %v620 = vpack.c.b16 %v608, %v607
        %vm633 = vcmask 523264
        %v635 = vsel %vm633, %v559, 0
        %637 = vmatpush.bf16.msra.mxu0 %v616
        %638 = vmatpush.bf16.msra.mxu0 %v615
        %639 = vmatpush.bf16.msra.mxu0 %v614
        %640 = vmatpush.bf16.msra.mxu0 %v613
        %641 = vmatpush.bf16.msra.mxu0 %v612
        %642 = vmatpush.bf16.msra.mxu0 %v611
        %643 = vmatpush.bf16.msra.mxu0 %v610
        %644 = vmatpush.bf16.msra.mxu0 %v609
        %645 = vmatmul.bf16.gmra.mxu0 %v558
        %v646 = vpop.f32.mrf.mxu0
        %v647 = vadd.f32 0.0, %v646
        %v648 = vpop.f32.mrf.mxu0
        %649 = vdwg.mxu0
        %650 = vmatpush.bf16.msra.mxu0 0
        %651 = vmatpush.bf16.msra.mxu0 0
        %652 = vmatpush.bf16.msra.mxu0 0
        %653 = vmatpush.bf16.msra.mxu0 0
        %654 = vmatpush.bf16.msra.mxu0 %v620
        %655 = vmatpush.bf16.msra.mxu0 %v619
        %656 = vmatpush.bf16.msra.mxu0 %v618
        %657 = vmatpush.bf16.msra.mxu0 %v617
        %658 = vmatmul.bf16.gmra.mxu0 %v635
        %v659 = vpop.f32.mrf.mxu0
        %v660 = vadd.f32 %v647, %v659
        %v661 = vpop.f32.mrf.mxu0
        %662 = vdwg.mxu0
        %v663 = vld [vmem:[%s2] sm:$0xff]
        %v664 = vadd.f32 %v663, %v660
        %v665 = vld [vmem:[%s3] sm:$0x3]
        %vm666 = vcmask 261120
        %v667 = vsel %vm666, %v664, 0.0
        %668 = vadd.xlane.f32.xlu0 %v667
        %v669 = vpop.xlane.xlu0 %668
        %v670 = vrcp.pop 32.0
        %v671 = vmul.f32 32.0, %v670
        %v672 = vsub.f32 1.0, %v671
        %v673 = vmul.f32 %v670, %v672
        %v674 = vadd.f32 %v670, %v673
        %vm675 = vweird.f32 %v670
        %v676 = vsel %vm675, %v670, %v674
        %v677 = vmul.f32 %v669, %v676
        %v678 = vsub.f32 %v664, %v677
        %v679 = vmul.f32 %v678, %v678
        %v680 = vsel %vm666, %v679, 0.0
        %681 = vadd.xlane.f32.xlu0 %v680
        %v682 = vpop.xlane.xlu0 %681
        %v683 = vmul.f32 %v682, %v676
        %v684 = vadd.f32 %v683, 1e-05
        %v685 = vrsqrt.pop %v684
        %v686 = vmul.f32 %v685, %v684
        %v687 = vmul.f32 %v686, %v685
        %v688 = vmul.f32 0.5, %v687
        %v689 = vsub.f32 1.5, %v688
        %v690 = vmul.f32 %v685, %v689
        %vm691 = vweird.f32 %v684
        %vm692 = vweird.f32 %v685
        %vm693 = vmor %vm691, %vm692
        %v694 = vsel %vm693, %v685, %v690
        %v695 = vmul.f32 %v678, %v694
        %v696 = vperm.slane %v665, 0
        %v697 = vmul.f32 %v695, %v696
        %v698 = vperm.slane %v665, 1
        %v699 = vadd.f32 %v697, %v698
        %700 = vst.msk [vmem:[%s524] sm:$0xff] %vm666, %v699
      $region68: #{vision_tower_forward.1} parent=63 // pred_fallthru
        _
      %v701 = vld [vmem:[%s493] sm:$0x3f]
      %v702 = vld [vmem:[%s524] sm:$0xff]
      %vm703 = vcmask 261120
      %v704 = vsel %vm703, %v702, 0.0
      %705 = vadd.xlane.f32.xlu0 %v704
      %v706 = vpop.xlane.xlu0 %705
      %v707 = vrcp.pop 32.0
      %v708 = vmul.f32 32.0, %v707
      %v709 = vsub.f32 1.0, %v708
      %v710 = vmul.f32 %v707, %v709
      %v711 = vadd.f32 %v707, %v710
      %vm712 = vweird.f32 %v707
      %v713 = vsel %vm712, %v707, %v711
      %v714 = vmul.f32 %v706, %v713
      %v715 = vsub.f32 %v702, %v714
      %v716 = vmul.f32 %v715, %v715
      %v717 = vsel %vm703, %v716, 0.0
      %718 = vadd.xlane.f32.xlu0 %v717
      %v719 = vpop.xlane.xlu0 %718
      %v720 = vmul.f32 %v719, %v713
      %v721 = vadd.f32 %v720, 1e-05
      %v722 = vrsqrt.pop %v721
      %v723 = vmul.f32 %v722, %v721
      %v724 = vmul.f32 %v723, %v722
      %v725 = vmul.f32 0.5, %v724
      %v726 = vsub.f32 1.5, %v725
      %v727 = vmul.f32 %v722, %v726
      %vm728 = vweird.f32 %v721
      %vm729 = vweird.f32 %v722
      %vm730 = vmor %vm728, %vm729
      %v731 = vsel %vm730, %v722, %v727
      %v732 = vmul.f32 %v715, %v731
      %v733 = vperm.slane %v701, 0
      %v734 = vmul.f32 %v732, %v733
      %v735 = vperm.slane %v701, 1
      %v736 = vadd.f32 %v734, %v735
      %v737 = vpack.c.bf16 %v736, %v736
      %v738 = vld [vmem:[%s498] sm:$0xf]
      %v739 = vld [vmem:[%s498 + $0x4] sm:$0xf]
      %v740 = vld [vmem:[%s498 + $0x8] sm:$0xf]
      %v741 = vld [vmem:[%s498 + $0xc] sm:$0xf]
      %v742 = vld [vmem:[%s498 + $0x10] sm:$0xf]
      %v743 = vld [vmem:[%s498 + $0x14] sm:$0xf]
      %v744 = vld [vmem:[%s498 + $0x18] sm:$0xf]
      %v745 = vld [vmem:[%s498 + $0x1c] sm:$0xf]
      %v746 = vld [vmem:[%s498 + $0x20] sm:$0xf]
      %v747 = vld [vmem:[%s498 + $0x24] sm:$0xf]
      %v748 = vld [vmem:[%s498 + $0x28] sm:$0xf]
      %v749 = vld [vmem:[%s498 + $0x2c] sm:$0xf]
      %v750 = vld [vmem:[%s498 + $0x30] sm:$0xf]
      %v751 = vld [vmem:[%s498 + $0x34] sm:$0xf]
      %v752 = vld [vmem:[%s498 + $0x38] sm:$0xf]
      %v753 = vld [vmem:[%s498 + $0x3c] sm:$0xf]
      %v754 = vld [vmem:[%s502] sm:$0x1]
      %v755 = vld [vmem:[%s502 + $0x1] sm:$0x1]
      %v756 = vld [vmem:[%s502 + $0x2] sm:$0x1]
      %v757 = vld [vmem:[%s502 + $0x3] sm:$0x1]
      %v762 = vperm.slane %v754, 0
      %v763 = vperm.slane %v755, 0
      %v764 = vperm.slane %v756, 0
      %v765 = vperm.slane %v757, 0
      %v774 = vunpack.c.l.b16 %v738
      %v775 = vunpack.c.l.b16 %v739
      %v776 = vunpack.c.l.b16 %v740
      %v777 = vunpack.c.l.b16 %v741
      %v778 = vpack.c.b16 %v775, %v774
      %v779 = vpack.c.b16 %v777, %v776
      %v783 = vsel %vm703, %v737, 0
      %785 = vmatpush.bf16.msra.mxu0 0
      %786 = vmatpush.bf16.msra.mxu0 0
      %787 = vmatpush.bf16.msra.mxu0 0
      %788 = vmatpush.bf16.msra.mxu0 0
      %789 = vmatpush.bf16.msra.mxu0 0
      %790 = vmatpush.bf16.msra.mxu0 0
      %791 = vmatpush.bf16.msra.mxu0 %v779
      %792 = vmatpush.bf16.msra.mxu0 %v778
      %793 = vmatmul.bf16.gmra.mxu0 %v783
      %v794 = vpop.f32.mrf.mxu0
      %v795 = vadd.f32 %v762, %v794
      %v796 = vpop.f32.mrf.mxu0
      %797 = vdwg.mxu0
      %v802 = vunpack.c.l.b16 %v742
      %v803 = vunpack.c.l.b16 %v743
      %v804 = vunpack.c.l.b16 %v744
      %v805 = vunpack.c.l.b16 %v745
      %v806 = vpack.c.b16 %v803, %v802
      %v807 = vpack.c.b16 %v805, %v804
      %810 = vmatpush.bf16.msra.mxu0 0
      %811 = vmatpush.bf16.msra.mxu0 0
      %812 = vmatpush.bf16.msra.mxu0 0
      %813 = vmatpush.bf16.msra.mxu0 0
      %814 = vmatpush.bf16.msra.mxu0 0
      %815 = vmatpush.bf16.msra.mxu0 0
      %816 = vmatpush.bf16.msra.mxu0 %v807
      %817 = vmatpush.bf16.msra.mxu0 %v806
      %818 = vmatmul.bf16.gmra.mxu0 %v783
      %v819 = vpop.f32.mrf.mxu0
      %v820 = vadd.f32 %v763, %v819
      %v821 = vpop.f32.mrf.mxu0
      %822 = vdwg.mxu0
      %v827 = vunpack.c.l.b16 %v746
      %v828 = vunpack.c.l.b16 %v747
      %v829 = vunpack.c.l.b16 %v748
      %v830 = vunpack.c.l.b16 %v749
      %v831 = vpack.c.b16 %v828, %v827
      %v832 = vpack.c.b16 %v830, %v829
      %835 = vmatpush.bf16.msra.mxu0 0
      %836 = vmatpush.bf16.msra.mxu0 0
      %837 = vmatpush.bf16.msra.mxu0 0
      %838 = vmatpush.bf16.msra.mxu0 0
      %839 = vmatpush.bf16.msra.mxu0 0
      %840 = vmatpush.bf16.msra.mxu0 0
      %841 = vmatpush.bf16.msra.mxu0 %v832
      %842 = vmatpush.bf16.msra.mxu0 %v831
      %843 = vmatmul.bf16.gmra.mxu0 %v783
      %v844 = vpop.f32.mrf.mxu0
      %v845 = vadd.f32 %v764, %v844
      %v846 = vpop.f32.mrf.mxu0
      %847 = vdwg.mxu0
      %v852 = vunpack.c.l.b16 %v750
      %v853 = vunpack.c.l.b16 %v751
      %v854 = vunpack.c.l.b16 %v752
      %v855 = vunpack.c.l.b16 %v753
      %v856 = vpack.c.b16 %v853, %v852
      %v857 = vpack.c.b16 %v855, %v854
      %860 = vmatpush.bf16.msra.mxu0 0
      %861 = vmatpush.bf16.msra.mxu0 0
      %862 = vmatpush.bf16.msra.mxu0 0
      %863 = vmatpush.bf16.msra.mxu0 0
      %864 = vmatpush.bf16.msra.mxu0 0
      %865 = vmatpush.bf16.msra.mxu0 0
      %866 = vmatpush.bf16.msra.mxu0 %v857
      %867 = vmatpush.bf16.msra.mxu0 %v856
      %868 = vmatmul.bf16.gmra.mxu0 %v783
      %v869 = vpop.f32.mrf.mxu0
      %v870 = vadd.f32 %v765, %v869
      %v871 = vpop.f32.mrf.mxu0
      %872 = vdwg.mxu0
      %v873 = vmul.f32 %v795, 0.35355338
      %v874 = vmul.f32 %v820, 0.35355338
      %v875 = vmul.f32 %v845, 0.35355338
      %v876 = vmul.f32 %v870, 0.35355338
      %v877 = vpack.c.bf16 %v873, %v873
      %v878 = vpack.c.bf16 %v874, %v874
      %v879 = vpack.c.bf16 %v875, %v875
      %v880 = vpack.c.bf16 %v876, %v876
      %v881 = vpack.c.bf16 %v795, %v795
      %v882 = vpack.c.bf16 %v820, %v820
      %v883 = vpack.c.bf16 %v845, %v845
      %v884 = vpack.c.bf16 %v870, %v870
      %v886 = vunpack.c.l.b16 %v881
      %v887 = vpack.c.b16 %v886, %v886
      %888 = vrot.lane.b32.xlu0 %v887, 120
      %v889 = vpop.permute.xlu0 %888
      %vm890 = vcmask 64512
      %v892 = vsel %vm890, %v877, 0
      %v895 = vsel %vm890, %v889, 0
      %897 = vmatpush.bf16.xpose.msra.mxu0 0
      %898 = vmatpush.bf16.xpose.msra.mxu0 0
      %899 = vmatpush.bf16.xpose.msra.mxu0 0
      %900 = vmatpush.bf16.xpose.msra.mxu0 0
      %901 = vmatpush.bf16.xpose.msra.mxu0 0
      %902 = vmatpush.bf16.xpose.msra.mxu0 0
      %903 = vmatpush.bf16.xpose.msra.mxu0 0
      %904 = vmatpush.bf16.xpose.msra.mxu0 %v895
      %905 = vmatmul.bf16.gmra.mxu0 %v892
      %v906 = vpop.f32.mrf.mxu0
      %v907 = vadd.f32 0.0, %v906
      %v908 = vpop.f32.mrf.mxu0
      %909 = vdwg.mxu0
      %v911 = vunpack.c.l.b16 %v882
      %v912 = vpack.c.b16 %v911, %v911
      %913 = vrot.lane.b32.xlu0 %v912, 120
      %v914 = vpop.permute.xlu0 %913
      %v916 = vsel %vm890, %v878, 0
      %v919 = vsel %vm890, %v914, 0
      %921 = vmatpush.bf16.xpose.msra.mxu0 0
      %922 = vmatpush.bf16.xpose.msra.mxu0 0
      %923 = vmatpush.bf16.xpose.msra.mxu0 0
      %924 = vmatpush.bf16.xpose.msra.mxu0 0
      %925 = vmatpush.bf16.xpose.msra.mxu0 0
      %926 = vmatpush.bf16.xpose.msra.mxu0 0
      %927 = vmatpush.bf16.xpose.msra.mxu0 0
      %928 = vmatpush.bf16.xpose.msra.mxu0 %v919
      %929 = vmatmul.bf16.gmra.mxu0 %v916
      %v930 = vpop.f32.mrf.mxu0
      %v931 = vadd.f32 0.0, %v930
      %v932 = vpop.f32.mrf.mxu0
      %933 = vdwg.mxu0
      %v935 = vunpack.c.l.b16 %v883
      %v936 = vpack.c.b16 %v935, %v935
      %937 = vrot.lane.b32.xlu0 %v936, 120
      %v938 = vpop.permute.xlu0 %937
      %v940 = vsel %vm890, %v879, 0
      %v943 = vsel %vm890, %v938, 0
      %945 = vmatpush.bf16.xpose.msra.mxu0 0
      %946 = vmatpush.bf16.xpose.msra.mxu0 0
      %947 = vmatpush.bf16.xpose.msra.mxu0 0
      %948 = vmatpush.bf16.xpose.msra.mxu0 0
      %949 = vmatpush.bf16.xpose.msra.mxu0 0
      %950 = vmatpush.bf16.xpose.msra.mxu0 0
      %951 = vmatpush.bf16.xpose.msra.mxu0 0
      %952 = vmatpush.bf16.xpose.msra.mxu0 %v943
      %953 = vmatmul.bf16.gmra.mxu0 %v940
      %v954 = vpop.f32.mrf.mxu0
      %v955 = vadd.f32 0.0, %v954
      %v956 = vpop.f32.mrf.mxu0
      %957 = vdwg.mxu0
      %v959 = vunpack.c.l.b16 %v884
      %v960 = vpack.c.b16 %v959, %v959
      %961 = vrot.lane.b32.xlu0 %v960, 120
      %v962 = vpop.permute.xlu0 %961
      %v964 = vsel %vm890, %v880, 0
      %v967 = vsel %vm890, %v962, 0
      %969 = vmatpush.bf16.xpose.msra.mxu0 0
      %970 = vmatpush.bf16.xpose.msra.mxu0 0
      %971 = vmatpush.bf16.xpose.msra.mxu0 0
      %972 = vmatpush.bf16.xpose.msra.mxu0 0
      %973 = vmatpush.bf16.xpose.msra.mxu0 0
      %974 = vmatpush.bf16.xpose.msra.mxu0 0
      %975 = vmatpush.bf16.xpose.msra.mxu0 0
      %976 = vmatpush.bf16.xpose.msra.mxu0 %v967
      %977 = vmatmul.bf16.gmra.mxu0 %v964
      %v978 = vpop.f32.mrf.mxu0
      %v979 = vadd.f32 0.0, %v978
      %v980 = vpop.f32.mrf.mxu0
      %981 = vdwg.mxu0
      %v982 = vlaneseq
      %v983 = vand.u32 %v982, 127
      %vm984 = vcmp.lt.s32.totalorder %v983, 5
      %v985 = vsel %vm984, %v907, -1e+30
      %v986 = vsel %vm984, %v931, -1e+30
      %v987 = vsel %vm984, %v955, -1e+30
      %v988 = vsel %vm984, %v979, -1e+30
      %v989 = vsel %vm890, %v985, -inf
      %990 = vmax.xlane.f32.xlu0 %v989
      %v991 = vpop.xlane.xlu0 %990
      %v992 = vsel %vm890, %v986, -inf
      %993 = vmax.xlane.f32.xlu0 %v992
      %v994 = vpop.xlane.xlu0 %993
      %v995 = vsel %vm890, %v987, -inf
      %996 = vmax.xlane.f32.xlu0 %v995
      %v997 = vpop.xlane.xlu0 %996
      %v998 = vsel %vm890, %v988, -inf
      %999 = vmax.xlane.f32.xlu0 %v998
      %v1000 = vpop.xlane.xlu0 %999
      %v1001 = vsub.f32 %v985, %v991
      %v1002 = vsub.f32 %v986, %v994
      %v1003 = vsub.f32 %v987, %v997
      %v1004 = vsub.f32 %v988, %v1000
      %v1005 = vmul.f32 %v1001, 1.442695
      %v1006 = vpow.pop %v1005
      %v1007 = vmul.f32 %v1002, 1.442695
      %v1008 = vpow.pop %v1007
      %v1009 = vmul.f32 %v1003, 1.442695
      %v1010 = vpow.pop %v1009
      %v1011 = vmul.f32 %v1004, 1.442695
      %v1012 = vpow.pop %v1011
      %v1013 = vsel %vm890, %v1006, 0.0
      %1014 = vadd.xlane.f32.xlu0 %v1013
      %v1015 = vpop.xlane.xlu0 %1014
      %v1016 = vsel %vm890, %v1008, 0.0
      %1017 = vadd.xlane.f32.xlu0 %v1016
      %v1018 = vpop.xlane.xlu0 %1017
      %v1019 = vsel %vm890, %v1010, 0.0
      %1020 = vadd.xlane.f32.xlu0 %v1019
      %v1021 = vpop.xlane.xlu0 %1020
      %v1022 = vsel %vm890, %v1012, 0.0
      %1023 = vadd.xlane.f32.xlu0 %v1022
      %v1024 = vpop.xlane.xlu0 %1023
      %v1025 = vrcp.pop %v1015
      %v1026 = vrcp.pop %v1018
      %v1027 = vrcp.pop %v1021
      %v1028 = vrcp.pop %v1024
      %v1029 = vmul.f32 %v1006, %v1025
      %v1030 = vmul.f32 %v1008, %v1026
      %v1031 = vmul.f32 %v1010, %v1027
      %v1032 = vmul.f32 %v1012, %v1028
      %v1033 = vpack.c.bf16 %v1029, %v1029
      %v1034 = vpack.c.bf16 %v1030, %v1030
      %v1035 = vpack.c.bf16 %v1031, %v1031
      %v1036 = vpack.c.bf16 %v1032, %v1032
      %1037 = vrot.lane.b32.xlu0 %v887, 112
      %v1038 = vpop.permute.xlu0 %1037
      %v1040 = vsel %vm890, %v1033, 0
      %vm1042 = vcmask 1043456
      %v1044 = vsel %vm1042, %v1038, 0
      %1046 = vmatpush.bf16.msra.mxu0 0
      %1047 = vmatpush.bf16.msra.mxu0 0
      %1048 = vmatpush.bf16.msra.mxu0 0
      %1049 = vmatpush.bf16.msra.mxu0 0
      %1050 = vmatpush.bf16.msra.mxu0 0
      %1051 = vmatpush.bf16.msra.mxu0 0
      %1052 = vmatpush.bf16.msra.mxu0 0
      %1053 = vmatpush.bf16.msra.mxu0 %v1044
      %1054 = vmatmul.bf16.gmra.mxu0 %v1040
      %v1055 = vpop.f32.mrf.mxu0
      %v1056 = vadd.f32 0.0, %v1055
      %v1057 = vpop.f32.mrf.mxu0
      %1058 = vdwg.mxu0
      %1059 = vrot.lane.b32.xlu0 %v912, 112
      %v1060 = vpop.permute.xlu0 %1059
      %v1062 = vsel %vm890, %v1034, 0
      %v1065 = vsel %vm1042, %v1060, 0
      %1067 = vmatpush.bf16.msra.mxu0 0
      %1068 = vmatpush.bf16.msra.mxu0 0
      %1069 = vmatpush.bf16.msra.mxu0 0
      %1070 = vmatpush.bf16.msra.mxu0 0
      %1071 = vmatpush.bf16.msra.mxu0 0
      %1072 = vmatpush.bf16.msra.mxu0 0
      %1073 = vmatpush.bf16.msra.mxu0 0
      %1074 = vmatpush.bf16.msra.mxu0 %v1065
      %1075 = vmatmul.bf16.gmra.mxu0 %v1062
      %v1076 = vpop.f32.mrf.mxu0
      %v1077 = vadd.f32 0.0, %v1076
      %v1078 = vpop.f32.mrf.mxu0
      %1079 = vdwg.mxu0
      %1080 = vrot.lane.b32.xlu0 %v936, 112
      %v1081 = vpop.permute.xlu0 %1080
      %v1083 = vsel %vm890, %v1035, 0
      %v1086 = vsel %vm1042, %v1081, 0
      %1088 = vmatpush.bf16.msra.mxu0 0
      %1089 = vmatpush.bf16.msra.mxu0 0
      %1090 = vmatpush.bf16.msra.mxu0 0
      %1091 = vmatpush.bf16.msra.mxu0 0
      %1092 = vmatpush.bf16.msra.mxu0 0
      %1093 = vmatpush.bf16.msra.mxu0 0
      %1094 = vmatpush.bf16.msra.mxu0 0
      %1095 = vmatpush.bf16.msra.mxu0 %v1086
      %1096 = vmatmul.bf16.gmra.mxu0 %v1083
      %v1097 = vpop.f32.mrf.mxu0
      %v1098 = vadd.f32 0.0, %v1097
      %v1099 = vpop.f32.mrf.mxu0
      %1100 = vdwg.mxu0
      %1101 = vrot.lane.b32.xlu0 %v960, 112
      %v1102 = vpop.permute.xlu0 %1101
      %v1104 = vsel %vm890, %v1036, 0
      %v1107 = vsel %vm1042, %v1102, 0
      %1109 = vmatpush.bf16.msra.mxu0 0
      %1110 = vmatpush.bf16.msra.mxu0 0
      %1111 = vmatpush.bf16.msra.mxu0 0
      %1112 = vmatpush.bf16.msra.mxu0 0
      %1113 = vmatpush.bf16.msra.mxu0 0
      %1114 = vmatpush.bf16.msra.mxu0 0
      %1115 = vmatpush.bf16.msra.mxu0 0
      %1116 = vmatpush.bf16.msra.mxu0 %v1107
      %1117 = vmatmul.bf16.gmra.mxu0 %v1104
      %v1118 = vpop.f32.mrf.mxu0
      %v1119 = vadd.f32 0.0, %v1118
      %v1120 = vpop.f32.mrf.mxu0
      %1121 = vdwg.mxu0
      %v1122 = vpack.c.bf16 %v1056, %v1056
      %v1123 = vpack.c.bf16 %v1077, %v1077
      %v1124 = vpack.c.bf16 %v1098, %v1098
      %v1125 = vpack.c.bf16 %v1119, %v1119
      %v1126 = vld [vmem:[%s507] sm:$0xf]
      %v1127 = vld [vmem:[%s507 + $0x4] sm:$0xf]
      %v1128 = vld [vmem:[%s507 + $0x8] sm:$0xf]
      %v1129 = vld [vmem:[%s507 + $0xc] sm:$0xf]
      %v1131 = vsel %vm890, %v1122, 0
      %v1134 = vsel %vm1042, %v1126, 0
      %1136 = vmatpush.bf16.msra.mxu0 0
      %1137 = vmatpush.bf16.msra.mxu0 0
      %1138 = vmatpush.bf16.msra.mxu0 0
      %1139 = vmatpush.bf16.msra.mxu0 0
      %1140 = vmatpush.bf16.msra.mxu0 0
      %1141 = vmatpush.bf16.msra.mxu0 0
      %1142 = vmatpush.bf16.msra.mxu0 0
      %1143 = vmatpush.bf16.msra.mxu0 %v1134
      %1144 = vmatmul.bf16.gmra.mxu0 %v1131
      %v1145 = vpop.f32.mrf.mxu0
      %v1146 = vadd.f32 0.0, %v1145
      %v1147 = vpop.f32.mrf.mxu0
      %1148 = vdwg.mxu0
      %v1150 = vsel %vm890, %v1123, 0
      %v1153 = vsel %vm1042, %v1127, 0
      %1155 = vmatpush.bf16.msra.mxu0 0
      %1156 = vmatpush.bf16.msra.mxu0 0
      %1157 = vmatpush.bf16.msra.mxu0 0
      %1158 = vmatpush.bf16.msra.mxu0 0
      %1159 = vmatpush.bf16.msra.mxu0 0
      %1160 = vmatpush.bf16.msra.mxu0 0
      %1161 = vmatpush.bf16.msra.mxu0 0
      %1162 = vmatpush.bf16.msra.mxu0 %v1153
      %1163 = vmatmul.bf16.gmra.mxu0 %v1150
      %v1164 = vpop.f32.mrf.mxu0
      %v1165 = vadd.f32 0.0, %v1164
      %v1166 = vpop.f32.mrf.mxu0
      %1167 = vdwg.mxu0
      %v1169 = vsel %vm890, %v1124, 0
      %v1172 = vsel %vm1042, %v1128, 0
      %1174 = vmatpush.bf16.msra.mxu0 0
      %1175 = vmatpush.bf16.msra.mxu0 0
      %1176 = vmatpush.bf16.msra.mxu0 0
      %1177 = vmatpush.bf16.msra.mxu0 0
      %1178 = vmatpush.bf16.msra.mxu0 0
      %1179 = vmatpush.bf16.msra.mxu0 0
      %1180 = vmatpush.bf16.msra.mxu0 0
      %1181 = vmatpush.bf16.msra.mxu0 %v1172
      %1182 = vmatmul.bf16.gmra.mxu0 %v1169
      %v1183 = vpop.f32.mrf.mxu0
      %v1184 = vadd.f32 0.0, %v1183
      %v1185 = vpop.f32.mrf.mxu0
      %1186 = vdwg.mxu0
      %v1188 = vsel %vm890, %v1125, 0
      %v1191 = vsel %vm1042, %v1129, 0
      %1193 = vmatpush.bf16.msra.mxu0 0
      %1194 = vmatpush.bf16.msra.mxu0 0
      %1195 = vmatpush.bf16.msra.mxu0 0
      %1196 = vmatpush.bf16.msra.mxu0 0
      %1197 = vmatpush.bf16.msra.mxu0 0
      %1198 = vmatpush.bf16.msra.mxu0 0
      %1199 = vmatpush.bf16.msra.mxu0 0
      %1200 = vmatpush.bf16.msra.mxu0 %v1191
      %1201 = vmatmul.bf16.gmra.mxu0 %v1188
      %v1202 = vpop.f32.mrf.mxu0
      %v1203 = vadd.f32 0.0, %v1202
      %v1204 = vpop.f32.mrf.mxu0
      %1205 = vdwg.mxu0
      %v1206 = vsel %vm703, %v1146, 0.0
      %v1207 = vsel %vm703, %v1165, 0.0
      %v1208 = vadd.f32 %v1206, %v1207
      %v1209 = vsel %vm703, %v1184, 0.0
      %v1210 = vadd.f32 %v1208, %v1209
      %v1211 = vsel %vm703, %v1203, 0.0
      %v1212 = vadd.f32 %v1210, %v1211
      %v1213 = vperm.slane %v701, 4
      %v1214 = vadd.f32 %v1212, %v1213
      %v1215 = vadd.f32 %v702, %v1214
      %v1216 = vsel %vm703, %v1215, 0.0
      %1217 = vadd.xlane.f32.xlu0 %v1216
      %v1218 = vpop.xlane.xlu0 %1217
      %v1219 = vmul.f32 %v1218, %v713
      %v1220 = vsub.f32 %v1215, %v1219
      %v1221 = vmul.f32 %v1220, %v1220
      %v1222 = vsel %vm703, %v1221, 0.0
      %1223 = vadd.xlane.f32.xlu0 %v1222
      %v1224 = vpop.xlane.xlu0 %1223
      %v1225 = vmul.f32 %v1224, %v713
      %v1226 = vadd.f32 %v1225, 1e-05
      %v1227 = vrsqrt.pop %v1226
      %v1228 = vmul.f32 %v1227, %v1226
      %v1229 = vmul.f32 %v1228, %v1227
      %v1230 = vmul.f32 0.5, %v1229
      %v1231 = vsub.f32 1.5, %v1230
      %v1232 = vmul.f32 %v1227, %v1231
      %vm1233 = vweird.f32 %v1226
      %vm1234 = vweird.f32 %v1227
      %vm1235 = vmor %vm1233, %vm1234
      %v1236 = vsel %vm1235, %v1227, %v1232
      %v1237 = vmul.f32 %v1220, %v1236
      %v1238 = vperm.slane %v701, 2
      %v1239 = vmul.f32 %v1237, %v1238
      %v1240 = vperm.slane %v701, 3
      %v1241 = vadd.f32 %v1239, %v1240
      %v1242 = vpack.c.bf16 %v1241, %v1241
      %v1243 = vld [vmem:[%s512] sm:$0xf]
      %v1244 = vld [vmem:[%s512 + $0x4] sm:$0xf]
      %v1245 = vld [vmem:[%s512 + $0x8] sm:$0xf]
      %v1246 = vld [vmem:[%s512 + $0xc] sm:$0xf]
      %v1247 = vld [vmem:[%s515] sm:$0x1]
      %v1249 = vperm.slane %v1247, 0
      %v1255 = vunpack.c.l.b16 %v1243
      %v1256 = vunpack.c.l.b16 %v1244
      %v1257 = vunpack.c.l.b16 %v1245
      %v1258 = vunpack.c.l.b16 %v1246
      %v1259 = vpack.c.b16 %v1256, %v1255
      %v1260 = vpack.c.b16 %v1258, %v1257
      %v1264 = vsel %vm703, %v1242, 0
      %1266 = vmatpush.bf16.msra.mxu0 0
      %1267 = vmatpush.bf16.msra.mxu0 0
      %1268 = vmatpush.bf16.msra.mxu0 0
      %1269 = vmatpush.bf16.msra.mxu0 0
      %1270 = vmatpush.bf16.msra.mxu0 0
      %1271 = vmatpush.bf16.msra.mxu0 0
      %1272 = vmatpush.bf16.msra.mxu0 %v1260
      %1273 = vmatpush.bf16.msra.mxu0 %v1259
      %1274 = vmatmul.bf16.gmra.mxu0 %v1264
      %v1275 = vpop.f32.mrf.mxu0
      %v1276 = vadd.f32 %v1249, %v1275
      %v1277 = vpop.f32.mrf.mxu0
      %1278 = vdwg.mxu0
      %v1279 = vmul.f32 %v1276, 1.702
      %v1280 = vxor.u32 %v1279, 2147483648
      %v1281 = vmul.f32 %v1280, 1.442695
      %v1282 = vpow.pop %v1281
      %v1283 = vadd.f32 %v1282, 1.0
      %v1284 = vrcp.pop %v1283
      %v1285 = vmul.f32 %v1283, %v1284
      %v1286 = vsub.f32 1.0, %v1285
      %v1287 = vmul.f32 %v1284, %v1286
      %v1288 = vadd.f32 %v1284, %v1287
      %vm1289 = vweird.f32 %v1283
      %vm1290 = vweird.f32 %v1284
      %vm1291 = vmor %vm1289, %vm1290
      %v1292 = vsel %vm1291, %v1284, %v1288
      %v1293 = vand.u32 2147483647, %v1283
      %vm1294 = vcmp.eq.f32.partialorder %v1293, 8.507059e+37
      %v1295 = vand.u32 %v1283, 2147483648
      %v1296 = vor.u32 1.1754944e-38, %v1295
      %v1297 = vsel %vm1294, %v1296, %v1292
      %v1298 = vmul.f32 1.0, %v1297
      %v1299 = vmul.f32 %v1276, %v1298
      %v1300 = vpack.c.bf16 %v1299, %v1299
      %v1301 = vld [vmem:[%s520] sm:$0xf]
      %v1302 = vld [vmem:[%s520 + $0x4] sm:$0xf]
      %v1303 = vld [vmem:[%s520 + $0x8] sm:$0xf]
      %v1304 = vld [vmem:[%s520 + $0xc] sm:$0xf]
      %v1305 = vld [vmem:[%s520 + $0x10] sm:$0xf]
      %v1306 = vld [vmem:[%s520 + $0x14] sm:$0xf]
      %v1307 = vld [vmem:[%s520 + $0x18] sm:$0xf]
      %v1308 = vld [vmem:[%s520 + $0x1c] sm:$0xf]
      %v1309 = vperm.slane %v701, 5
      %v1318 = vunpack.c.l.b16 %v1301
      %v1319 = vunpack.c.l.b16 %v1302
      %v1320 = vunpack.c.l.b16 %v1303
      %v1321 = vunpack.c.l.b16 %v1304
      %v1322 = vunpack.c.l.b16 %v1305
      %v1323 = vunpack.c.l.b16 %v1306
      %v1324 = vunpack.c.l.b16 %v1307
      %v1325 = vunpack.c.l.b16 %v1308
      %v1326 = vpack.c.b16 %v1319, %v1318
      %v1327 = vpack.c.b16 %v1321, %v1320
      %v1328 = vpack.c.b16 %v1323, %v1322
      %v1329 = vpack.c.b16 %v1325, %v1324
      %vm1334 = vcmask 523264
      %v1336 = vsel %vm1334, %v1300, 0
      %1338 = vmatpush.bf16.msra.mxu0 0
      %1339 = vmatpush.bf16.msra.mxu0 0
      %1340 = vmatpush.bf16.msra.mxu0 0
      %1341 = vmatpush.bf16.msra.mxu0 0
      %1342 = vmatpush.bf16.msra.mxu0 %v1329
      %1343 = vmatpush.bf16.msra.mxu0 %v1328
      %1344 = vmatpush.bf16.msra.mxu0 %v1327
      %1345 = vmatpush.bf16.msra.mxu0 %v1326
      %1346 = vmatmul.bf16.gmra.mxu0 %v1336
      %v1347 = vpop.f32.mrf.mxu0
      %v1348 = vadd.f32 %v1309, %v1347
      %v1349 = vpop.f32.mrf.mxu0
      %1350 = vdwg.mxu0
      %v1351 = vadd.f32 %v1215, %v1348
      %1352 = vst.msk [vmem:[%s524] sm:$0xff] %vm703, %v1351
      %p1353 = scmp.lt.s32.totalorder %s26, 1
      %s1354 = scalar_select %p1353, %s26, 1
      %s1355 = smul.addr %s1354, 8
      %s1356 = scalar_lea.vmem %s11, %s1355
      // Predicated region
      $region69: #{vision_tower_forward.1} parent=63 // pred_check
        %p1357 = pneg %p323
      $region70: #{vision_tower_forward.1} parent=63 // pred_check_branch
        %1359 = sbr.rel (%p1357) target = $region72
      $region71: #{vision_tower_forward.1} parent=63 // pred_region
        _
      $region72: #{vision_tower_forward.1} parent=63 // pred_fallthru
        _
    $region64: #{vision_tower_forward.1} parent=5 // pred_fallthru
      _
    %p1360 = scmp.le.s32.totalorder 2, %s17
    // Predicated region
    $region73: #{vision_tower_forward.1} parent=5 // pred_check
      %p1361 = pneg %p1360
    $region74: #{vision_tower_forward.1} parent=5 // pred_check_branch
      %1363 = sbr.rel (%p1361) target = $region76
    $region75: #{vision_tower_forward.1} parent=5 // pred_region
      %s1364 = ssub.s32 %s17, 2
      // Predicated region
      $region77: #{vision_tower_forward.1} parent=75 // pred_check
        %p1365 = pneg %p329
      $region78: #{vision_tower_forward.1} parent=75 // pred_check_branch
        %1367 = sbr.rel (%p1365) target = $region80
      $region79: #{vision_tower_forward.1} parent=75 // pred_region
        %p1368 = scmp.lt.s32.totalorder %s28, 1
        %s1369 = scalar_select %p1368, %s28, 1
        %s1370 = smul.addr %s1369, 8
        %s1371 = scalar_lea.vmem %s11, %s1370
      $region80: #{vision_tower_forward.1} parent=75 // pred_fallthru
        _
    $region76: #{vision_tower_forward.1} parent=5 // pred_fallthru
      _
  $region6: #{vision_tower_forward.1} parent=0 // loop_footer
    %s21 = sadd.s32 1, %s17
  $region7: #{vision_tower_forward.1} parent=0 // loop_footer_branch
    %16 = sbr.rel target = $region3
  $region8: #{vision_tower_forward.1} parent=0 // loop_exit
    _

</llo_original>
